<compile_context>
chip_gen: v7x
topology: tpu7x:2x2x1
jax: 0.10.0
libtpu: 0.0.40
codegen_flags: <defaults>
</compile_context>

<pallas_src>
import functools

import jax
import jax.numpy as jnp
from jax.experimental import pallas as pl
from jax.experimental.pallas import tpu as pltpu

K = 5            # temporal conv kernel size ('K5')
LANE = 128       # TPU lane width; channel axes are zero-padded to this multiple
_VMEM_BUDGET_BYTES = 20 * 1024 * 1024   # per-block working-set target (v7x-safe)


def _round_up(n, m):
    return ((n + m - 1) // m) * m


def _tensorcores_per_chip():
    """Best-effort detection of multi-TensorCore chips (v7x). Defaults to 1."""
    try:
        kind = (jax.devices()[0].device_kind or "").lower()
    except Exception:
        return 1
    return 2 if ("v7" in kind or "tpu7" in kind) else 1


def _vmem_block_estimate(B_blk, T, C_pad, H_pad, io_itemsize, mm_itemsize):
    """Rough per-grid-step VMEM working set (bytes)."""
    T1 = T - (K - 1)
    P1 = T1 // 2
    T2 = P1 - (K - 1)
    P2 = max(T2 // 2, 1)
    f32 = 4
    x_blk = 2 * B_blk * T * C_pad * io_itemsize            # double-buffered input block
    o_blk = 2 * B_blk * P2 * H_pad * io_itemsize           # double-buffered output block
    consts = 2 * (K * C_pad * H_pad + K * H_pad * H_pad) * mm_itemsize \
        + 2 * 4 * H_pad * f32                               # weight slabs + scale/shift
    temps = (B_blk * T1 * K * C_pad * mm_itemsize           # im2col X (K-fold expansion)
             + B_blk * T1 * H_pad * f32                     # conv1 activations
             + B_blk * P1 * H_pad * (f32 + mm_itemsize)     # pooled (+ bf16 copy)
             + B_blk * T2 * K * H_pad * mm_itemsize         # im2col Y
             + B_blk * T2 * H_pad * f32)                    # conv2 activations
    return x_blk + o_blk + consts + temps


def _pick_num_blocks(B, T, C_pad, H_pad, io_itemsize, mm_itemsize):
    T1 = T - (K - 1)
    ncores = _tensorcores_per_chip()
    # Fill the MXU M dimension (~256 rows of B_blk*T1) before splitting the
    # grid; always give every TensorCore at least one block.
    want = min(B, max(ncores, (B * T1) // 256))
    divisors = [d for d in range(1, B + 1) if B % d == 0]
    nb = max(d for d in divisors if d <= want)
    # Grow the number of blocks until the per-block VMEM estimate fits the
    # budget (matters on v7x: 64 MiB physical, ~32 MiB scoped default).
    for d in divisors:
        if d < nb:
            continue
        nb = d
        if _vmem_block_estimate(B // d, T, C_pad, H_pad,
                                io_itemsize, mm_itemsize) <= _VMEM_BUDGET_BYTES:
            break
    return nb


def temporal_conv_kernel(x_ref, w1_ref, s1_ref, t1_ref,
                         w2_ref, s2_ref, t2_ref, o_ref, *,
                         im2col_1=True, im2col_2=True):
    """One grid step: B_blk batch elements through the full pipeline.

    x_ref : (B_blk, T, C_pad)   channels-last, lane-padded input
    w1_ref: (K*C_pad, H_pad)    im2col weight slab, conv1 (bf16 or f32)
    w2_ref: (K*H_pad, H_pad)    im2col weight slab, conv2
    s*/t* : (1, H_pad)          folded BN scale / (conv-bias + BN) shift, f32
    o_ref : (B_blk, P2, H_pad)
    """
    B_blk, T, C_pad = x_ref.shape
    H_pad = w1_ref.shape[1]
    T1 = T - (K - 1)          # after conv1
    P1 = T1 // 2              # after pool1
    T2 = P1 - (K - 1)         # after conv2
    P2 = T2 // 2              # after pool2
    M1 = B_blk * T1
    M2 = B_blk * T2

    mm_dtype = w1_ref.dtype
    x = x_ref[...].astype(mm_dtype)                      # (B_blk, T, C_pad)

    # ---- Conv1d(C_in -> H, k=5, s=1, p=0), batch merged into the M axis ----
    if im2col_1:
        # K shifted windows concatenated along lanes (128-aligned pieces),
        # built block-wide, then one matmul with M = B_blk*T1 rows.
        X = jnp.concatenate([x[:, k:k + T1, :] for k in range(K)], axis=-1)
        acc1 = jnp.dot(X.reshape(M1, K * C_pad), w1_ref[...],
                       preferred_element_type=jnp.float32)
    else:
        # K accumulating matmuls: keeps activations at 1x (no K-fold im2col
        # temporary) for large blocks.
        acc1 = jnp.dot(x[:, 0:T1, :].reshape(M1, C_pad), w1_ref[0:C_pad, :],
                       preferred_element_type=jnp.float32)
        for k in range(1, K):
            acc1 = acc1 + jnp.dot(x[:, k:k + T1, :].reshape(M1, C_pad),
                                  w1_ref[k * C_pad:(k + 1) * C_pad, :],
                                  preferred_element_type=jnp.float32)
    # Folded inference BatchNorm (conv bias folded into shift) + ReLU, f32.
    y = jnp.maximum(acc1 * s1_ref[...] + t1_ref[...], 0.0)       # (M1, H_pad)
    y = y.reshape(B_blk, T1, H_pad)

    # ---- MaxPool1d(k=2, floor), block-wide ----
    p = jnp.max(y[:, :2 * P1, :].reshape(B_blk, P1, 2, H_pad), axis=2)
    p = p.astype(mm_dtype)                                        # (B_blk, P1, H_pad)

    # ---- Conv1d(H -> H, k=5) + BN + ReLU ----
    if im2col_2:
        Y = jnp.concatenate([p[:, k:k + T2, :] for k in range(K)], axis=-1)
        acc2 = jnp.dot(Y.reshape(M2, K * H_pad), w2_ref[...],
                       preferred_element_type=jnp.float32)
    else:
        acc2 = jnp.dot(p[:, 0:T2, :].reshape(M2, H_pad), w2_ref[0:H_pad, :],
                       preferred_element_type=jnp.float32)
        for k in range(1, K):
            acc2 = acc2 + jnp.dot(p[:, k:k + T2, :].reshape(M2, H_pad),
                                  w2_ref[k * H_pad:(k + 1) * H_pad, :],
                                  preferred_element_type=jnp.float32)
    z = jnp.maximum(acc2 * s2_ref[...] + t2_ref[...], 0.0)        # (M2, H_pad)
    z = z.reshape(B_blk, T2, H_pad)

    # ---- MaxPool1d(k=2) + a single block-wide lane-dense store ----
    o_ref[...] = jnp.max(z[:, :2 * P2, :].reshape(B_blk, P2, 2, H_pad),
                         axis=2).astype(o_ref.dtype)


def temporal_conv(x, params, *, num_blocks=None,
                  im2col_bytes_limit=2 * 1024 * 1024, strip_padding=True):
    """x: (B, T, C_in) float32 -> (B, T_out, H) float32 (lane padding stripped)."""
    B, T, C_in = x.shape
    H = params["H"]
    w1, s1, t1 = params["w1"], params["s1"], params["t1"]
    w2, s2, t2 = params["w2"], params["s2"], params["t2"]
    C_pad = w1.shape[0] // K
    H_pad = w1.shape[1]
    assert C_pad >= C_in and H_pad >= H

    T1 = T - (K - 1)
    P1 = T1 // 2
    T2 = P1 - (K - 1)
    P2 = T2 // 2
    assert P2 > 0, "sequence too short for conv_type=2 pipeline"

    io_itemsize = jnp.dtype(x.dtype).itemsize
    mm_itemsize = jnp.dtype(w1.dtype).itemsize

    if num_blocks is None:
        num_blocks = _pick_num_blocks(B, T, C_pad, H_pad, io_itemsize, mm_itemsize)
    assert B % num_blocks == 0
    B_blk = B // num_blocks

    # Lane-pad the channel axis so every in-kernel concat/matmul/store is
    # 128-lane dense.
    if C_pad != C_in:
        x = jnp.pad(x, ((0, 0), (0, 0), (0, C_pad - C_in)))

    # Single im2col matmul for small blocks; K accumulating matmuls when the
    # materialized im2col temporary would be large.
    im2col_1 = B_blk * T1 * K * C_pad * mm_itemsize <= im2col_bytes_limit
    im2col_2 = B_blk * T2 * K * H_pad * mm_itemsize <= im2col_bytes_limit
    kernel = functools.partial(temporal_conv_kernel,
                               im2col_1=im2col_1, im2col_2=im2col_2)

    const_bytes = sum(int(a.size) * jnp.dtype(a.dtype).itemsize
                      for a in (w1, s1, t1, w2, s2, t2))
    cost = pl.CostEstimate(
        flops=int(2 * B * T1 * (K * C_pad) * H_pad
                  + 2 * B * T2 * (K * H_pad) * H_pad),
        transcendentals=0,
        bytes_accessed=int(x.size * io_itemsize + const_bytes
                           + B * P2 * H_pad * io_itemsize))

    est = _vmem_block_estimate(B_blk, T, C_pad, H_pad, io_itemsize, mm_itemsize)
    vmem_limit = int(min(2 * est, 48 * 1024 * 1024)) if est > 12 * 1024 * 1024 else None

    def const_spec(a):
        n = a.ndim
        return pl.BlockSpec(a.shape, lambda i, _n=n: (0,) * _n)

    out = pl.pallas_call(
        kernel,
        out_shape=jax.ShapeDtypeStruct((B, P2, H_pad), x.dtype),
        grid=(num_blocks,),
        in_specs=[
            pl.BlockSpec((B_blk, T, C_pad), lambda i: (i, 0, 0)),  # x block
            const_spec(w1),   # conv1 im2col weight slab
            const_spec(s1),   # bn1 scale
            const_spec(t1),   # bn1 shift (+ conv bias)
            const_spec(w2),   # conv2 im2col weight slab
            const_spec(s2),   # bn2 scale
            const_spec(t2),   # bn2 shift (+ conv bias)
        ],
        out_specs=pl.BlockSpec((B_blk, P2, H_pad), lambda i: (i, 0, 0)),
        compiler_params=pltpu.CompilerParams(
            dimension_semantics=("parallel",),
            vmem_limit_bytes=vmem_limit),
        cost_estimate=cost,
    )(x, w1, s1, t1, w2, s2, t2)

    if strip_padding and H_pad != H:
        out = out[..., :H]
    return out


def make_raw_params(key, input_size, hidden_size):
    """Random torch-equivalent params (conv weights, biases, BN stats)."""
    ks = jax.random.split(key, 8)
    H = hidden_size
    fan1 = input_size * K
    # Conv weights stored as (K, C_in, C_out); the equivalent torch weight is
    # w_torch[o, i, k] = w[k, i, o].
    w1 = jax.random.uniform(ks[0], (K, input_size, H), jnp.float32,
                            -1.0, 1.0) / jnp.sqrt(fan1)
    b1 = jax.random.uniform(ks[1], (1, H), jnp.float32, -1.0, 1.0) / jnp.sqrt(fan1)
    fan2 = H * K
    w2 = jax.random.uniform(ks[2], (K, H, H), jnp.float32,
                            -1.0, 1.0) / jnp.sqrt(fan2)
    b2 = jax.random.uniform(ks[3], (1, H), jnp.float32, -1.0, 1.0) / jnp.sqrt(fan2)

    # BatchNorm1d params (inference mode, running stats).
    g1 = 1.0 + 0.1 * jax.random.normal(ks[4], (1, H), jnp.float32)
    be1 = 0.1 * jax.random.normal(ks[5], (1, H), jnp.float32)
    m1 = jnp.zeros((1, H), jnp.float32)
    v1 = jnp.ones((1, H), jnp.float32)
    g2 = 1.0 + 0.1 * jax.random.normal(ks[6], (1, H), jnp.float32)
    be2 = 0.1 * jax.random.normal(ks[7], (1, H), jnp.float32)
    m2 = jnp.zeros((1, H), jnp.float32)
    v2 = jnp.ones((1, H), jnp.float32)
    return dict(input_size=input_size, H=H,
                w1=w1, b1=b1, g1=g1, be1=be1, m1=m1, v1=v1,
                w2=w2, b2=b2, g2=g2, be2=be2, m2=m2, v2=v2)


def pack_params(raw, *, matmul_dtype=jnp.bfloat16, eps=1e-5):
    """Pack raw params into lane-padded, BN-folded kernel params."""
    C_in, H = raw["input_size"], raw["H"]
    C_pad = _round_up(C_in, LANE)
    H_pad = _round_up(H, LANE)

    # Fold BN into per-channel scale/shift and fold the conv bias into the
    # shift:  (conv(x)+b - m)*s + be  ==  conv(x)*s + ((b - m)*s + be)
    s1 = raw["g1"] / jnp.sqrt(raw["v1"] + eps)
    t1 = (raw["b1"] - raw["m1"]) * s1 + raw["be1"]
    s2 = raw["g2"] / jnp.sqrt(raw["v2"] + eps)
    t2 = (raw["b2"] - raw["m2"]) * s2 + raw["be2"]

    # im2col weight slabs: row (k*C_pad + c) holds tap (k, c); zero padding on
    # both channel axes keeps padded lanes exactly zero through the network.
    w1_slab = jnp.zeros((K, C_pad, H_pad), jnp.float32)
    w1_slab = w1_slab.at[:, :C_in, :H].set(raw["w1"]).reshape(K * C_pad, H_pad)
    w2_slab = jnp.zeros((K, H_pad, H_pad), jnp.float32)
    w2_slab = w2_slab.at[:, :H, :H].set(raw["w2"]).reshape(K * H_pad, H_pad)

    def pad_lane(v):
        return jnp.zeros((1, H_pad), jnp.float32).at[:, :H].set(v)

    return dict(H=H,
                w1=w1_slab.astype(matmul_dtype), s1=pad_lane(s1), t1=pad_lane(t1),
                w2=w2_slab.astype(matmul_dtype), s2=pad_lane(s2), t2=pad_lane(t2))


def temporal_conv_ref(x, raw, eps=1e-5):
    """Pure-JAX (non-Pallas) f32 reference of the inference-mode pipeline."""
    def conv_bn_relu(h, w, b, g, be, m, v):
        T1 = h.shape[1] - (K - 1)
        acc = b + sum(jnp.einsum("btc,co->bto", h[:, k:k + T1, :], w[k])
                      for k in range(K))
        y = (acc - m) / jnp.sqrt(v + eps) * g + be
        return jnp.maximum(y, 0.0)

    def pool2(h):
        Bh, Th, Hc = h.shape
        P = Th // 2
        return jnp.max(h[:, :2 * P].reshape(Bh, P, 2, Hc), axis=2)

    h = conv_bn_relu(x, raw["w1"], raw["b1"], raw["g1"], raw["be1"],
                     raw["m1"], raw["v1"])
    h = pool2(h)
    h = conv_bn_relu(h, raw["w2"], raw["b2"], raw["g2"], raw["be2"],
                     raw["m2"], raw["v2"])
    return pool2(h)


if __name__ == "__main__":
    B, T, C_IN, H = 2, 32, 16, 32      # batch, seq len, input_size, hidden_size
    key = jax.random.PRNGKey(0)
    kx, kp = jax.random.split(key)
    x = jax.random.normal(kx, (B, T, C_IN), jnp.float32)
    raw = make_raw_params(kp, C_IN, H)
    ref = jax.block_until_ready(temporal_conv_ref(x, raw))
    T_OUT = ((T - 4) // 2 - 4) // 2     # 5

    # 1) f32 MXU operands: exact parity with the reference.
    p32 = pack_params(raw, matmul_dtype=jnp.float32)
    out32 = jax.block_until_ready(temporal_conv(x, p32))
    assert out32.shape == (B, T_OUT, H), out32.shape
    assert jnp.allclose(out32, ref, rtol=1e-4, atol=1e-4), \
        float(jnp.max(jnp.abs(out32 - ref)))

    # 2) bf16 MXU operands (default fast path; accumulation stays f32).
    pbf = pack_params(raw)  # bf16 weight slabs
    outbf = jax.block_until_ready(temporal_conv(x, pbf))
    assert outbf.shape == (B, T_OUT, H), outbf.shape
    assert jnp.allclose(outbf, ref, rtol=3e-2, atol=3e-2), \
        float(jnp.max(jnp.abs(outbf - ref)))

    # 3) Exercise the K-accumulate (non-im2col) path and a 2-step grid.
    outka = jax.block_until_ready(
        temporal_conv(x, p32, num_blocks=2, im2col_bytes_limit=0))
    assert jnp.allclose(outka, ref, rtol=1e-4, atol=1e-4), \
        float(jnp.max(jnp.abs(outka - ref)))

    print("KERNEL_OK")
</pallas_src>

<mosaic_0001>
module attributes {stable_mosaic.version = 11 : i64} {
  func.func @temporal_conv_kernel(%arg0: i32, %arg1: memref<2x32x128xf32, #tpu.memory_space<vmem>>, %arg2: memref<640x128xf32, #tpu.memory_space<vmem>>, %arg3: memref<1x128xf32, #tpu.memory_space<vmem>>, %arg4: memref<1x128xf32, #tpu.memory_space<vmem>>, %arg5: memref<640x128xf32, #tpu.memory_space<vmem>>, %arg6: memref<1x128xf32, #tpu.memory_space<vmem>>, %arg7: memref<1x128xf32, #tpu.memory_space<vmem>>, %arg8: memref<2x5x128xf32, #tpu.memory_space<vmem>>) attributes {dimension_semantics = [#tpu.dimension_semantics<parallel>], iteration_bounds = array<i64: 1>, scalar_prefetch = 0 : i64, scratch_operands = 0 : i64, tpu.core_type = #tpu.core_type<tc>, window_params = [{transform_indices = @transform_0, window_bounds = array<i64: 2, 32, 128>}, {pipeline_mode = #tpu.pipeline_mode<synchronous>, transform_indices = @transform_1, window_bounds = array<i64: 640, 128>}, {pipeline_mode = #tpu.pipeline_mode<synchronous>, transform_indices = @transform_2, window_bounds = array<i64: 1, 128>}, {pipeline_mode = #tpu.pipeline_mode<synchronous>, transform_indices = @transform_3, window_bounds = array<i64: 1, 128>}, {pipeline_mode = #tpu.pipeline_mode<synchronous>, transform_indices = @transform_4, window_bounds = array<i64: 640, 128>}, {pipeline_mode = #tpu.pipeline_mode<synchronous>, transform_indices = @transform_5, window_bounds = array<i64: 1, 128>}, {pipeline_mode = #tpu.pipeline_mode<synchronous>, transform_indices = @transform_6, window_bounds = array<i64: 1, 128>}, {transform_indices = @transform_7, window_bounds = array<i64: 2, 5, 128>}]} {
    %c0 = arith.constant 0 : index
    %c0_0 = arith.constant 0 : index
    %c0_1 = arith.constant 0 : index
    %0 = vector.load %arg1[%c0, %c0_0, %c0_1] : memref<2x32x128xf32, #tpu.memory_space<vmem>>, vector<2x32x128xf32>
    %1 = vector.extract_strided_slice %0 {offsets = [0, 0, 0], sizes = [2, 28, 128], strides = [1, 1, 1]} : vector<2x32x128xf32> to vector<2x28x128xf32>
    %2 = vector.extract_strided_slice %0 {offsets = [0, 1, 0], sizes = [2, 28, 128], strides = [1, 1, 1]} : vector<2x32x128xf32> to vector<2x28x128xf32>
    %3 = vector.extract_strided_slice %0 {offsets = [0, 2, 0], sizes = [2, 28, 128], strides = [1, 1, 1]} : vector<2x32x128xf32> to vector<2x28x128xf32>
    %4 = vector.extract_strided_slice %0 {offsets = [0, 3, 0], sizes = [2, 28, 128], strides = [1, 1, 1]} : vector<2x32x128xf32> to vector<2x28x128xf32>
    %5 = vector.extract_strided_slice %0 {offsets = [0, 4, 0], sizes = [2, 28, 128], strides = [1, 1, 1]} : vector<2x32x128xf32> to vector<2x28x128xf32>
    %6 = tpu.concatenate %1, %2, %3, %4, %5 in 2 : vector<2x28x128xf32>, vector<2x28x128xf32>, vector<2x28x128xf32>, vector<2x28x128xf32>, vector<2x28x128xf32> -> vector<2x28x640xf32>
    %7 = vector.shape_cast %6 : vector<2x28x640xf32> to vector<56x640xf32>
    %c0_2 = arith.constant 0 : index
    %c0_3 = arith.constant 0 : index
    %8 = vector.load %arg2[%c0_2, %c0_3] : memref<640x128xf32, #tpu.memory_space<vmem>>, vector<640x128xf32>
    %cst = arith.constant dense<0.000000e+00> : vector<56x128xf32>
    %9 = tpu.matmul %7, %8, %cst {dimension_numbers = #tpu.dot_dimension_numbers<[1], [0], [0], [1], [0, 0, 1, 1], [], []>} : vector<56x640xf32>, vector<640x128xf32>, vector<56x128xf32> -> vector<56x128xf32>
    %c0_4 = arith.constant 0 : index
    %c0_5 = arith.constant 0 : index
    %10 = vector.load %arg3[%c0_4, %c0_5] : memref<1x128xf32, #tpu.memory_space<vmem>>, vector<1x128xf32>
    %11 = vector.broadcast %10 : vector<1x128xf32> to vector<56x128xf32>
    %12 = arith.mulf %9, %11 : vector<56x128xf32>
    %c0_6 = arith.constant 0 : index
    %c0_7 = arith.constant 0 : index
    %13 = vector.load %arg4[%c0_6, %c0_7] : memref<1x128xf32, #tpu.memory_space<vmem>>, vector<1x128xf32>
    %14 = vector.broadcast %13 : vector<1x128xf32> to vector<56x128xf32>
    %15 = arith.addf %12, %14 : vector<56x128xf32>
    %cst_8 = arith.constant 0.000000e+00 : f32
    %16 = vector.broadcast %cst_8 : f32 to vector<56x128xf32>
    %17 = arith.maximumf %15, %16 : vector<56x128xf32>
    %18 = vector.shape_cast %17 : vector<56x128xf32> to vector<2x28x128xf32>
    %19 = vector.shape_cast %18 : vector<2x28x128xf32> to vector<2x14x2x128xf32>
    %cst_9 = arith.constant dense<0xFF800000> : vector<2x14x128xf32>
    %20 = vector.multi_reduction <maximumf>, %19, %cst_9 [2] : vector<2x14x2x128xf32> to vector<2x14x128xf32>
    %21 = vector.extract_strided_slice %20 {offsets = [0, 0, 0], sizes = [2, 10, 128], strides = [1, 1, 1]} : vector<2x14x128xf32> to vector<2x10x128xf32>
    %22 = vector.extract_strided_slice %20 {offsets = [0, 1, 0], sizes = [2, 10, 128], strides = [1, 1, 1]} : vector<2x14x128xf32> to vector<2x10x128xf32>
    %23 = vector.extract_strided_slice %20 {offsets = [0, 2, 0], sizes = [2, 10, 128], strides = [1, 1, 1]} : vector<2x14x128xf32> to vector<2x10x128xf32>
    %24 = vector.extract_strided_slice %20 {offsets = [0, 3, 0], sizes = [2, 10, 128], strides = [1, 1, 1]} : vector<2x14x128xf32> to vector<2x10x128xf32>
    %25 = vector.extract_strided_slice %20 {offsets = [0, 4, 0], sizes = [2, 10, 128], strides = [1, 1, 1]} : vector<2x14x128xf32> to vector<2x10x128xf32>
    %26 = tpu.concatenate %21, %22, %23, %24, %25 in 2 : vector<2x10x128xf32>, vector<2x10x128xf32>, vector<2x10x128xf32>, vector<2x10x128xf32>, vector<2x10x128xf32> -> vector<2x10x640xf32>
    %27 = vector.shape_cast %26 : vector<2x10x640xf32> to vector<20x640xf32>
    %c0_10 = arith.constant 0 : index
    %c0_11 = arith.constant 0 : index
    %28 = vector.load %arg5[%c0_10, %c0_11] : memref<640x128xf32, #tpu.memory_space<vmem>>, vector<640x128xf32>
    %cst_12 = arith.constant dense<0.000000e+00> : vector<20x128xf32>
    %29 = tpu.matmul %27, %28, %cst_12 {dimension_numbers = #tpu.dot_dimension_numbers<[1], [0], [0], [1], [0, 0, 1, 1], [], []>} : vector<20x640xf32>, vector<640x128xf32>, vector<20x128xf32> -> vector<20x128xf32>
    %c0_13 = arith.constant 0 : index
    %c0_14 = arith.constant 0 : index
    %30 = vector.load %arg6[%c0_13, %c0_14] : memref<1x128xf32, #tpu.memory_space<vmem>>, vector<1x128xf32>
    %31 = vector.broadcast %30 : vector<1x128xf32> to vector<20x128xf32>
    %32 = arith.mulf %29, %31 : vector<20x128xf32>
    %c0_15 = arith.constant 0 : index
    %c0_16 = arith.constant 0 : index
    %33 = vector.load %arg7[%c0_15, %c0_16] : memref<1x128xf32, #tpu.memory_space<vmem>>, vector<1x128xf32>
    %34 = vector.broadcast %33 : vector<1x128xf32> to vector<20x128xf32>
    %35 = arith.addf %32, %34 : vector<20x128xf32>
    %cst_17 = arith.constant 0.000000e+00 : f32
    %36 = vector.broadcast %cst_17 : f32 to vector<20x128xf32>
    %37 = arith.maximumf %35, %36 : vector<20x128xf32>
    %38 = vector.shape_cast %37 : vector<20x128xf32> to vector<2x10x128xf32>
    %39 = vector.shape_cast %38 : vector<2x10x128xf32> to vector<2x5x2x128xf32>
    %cst_18 = arith.constant dense<0xFF800000> : vector<2x5x128xf32>
    %40 = vector.multi_reduction <maximumf>, %39, %cst_18 [2] : vector<2x5x2x128xf32> to vector<2x5x128xf32>
    %c0_19 = arith.constant 0 : index
    %c0_20 = arith.constant 0 : index
    %c0_21 = arith.constant 0 : index
    %41 = vector.load %arg8[%c0_19, %c0_20, %c0_21] : memref<2x5x128xf32, #tpu.memory_space<vmem>>, vector<2x5x128xf32>
    tpu.vector_store %arg8[%c0_19, %c0_20, %c0_21], %40 {strides = array<i32>} : memref<2x5x128xf32, #tpu.memory_space<vmem>>, vector<2x5x128xf32>,
    return
  }
  func.func @transform_0(%arg0: i32) -> (i32, i32, i32) {
    %c0_i32 = arith.constant 0 : i32
    %c0_i32_0 = arith.constant 0 : i32
    %c0_i32_1 = arith.constant 0 : i32
    return %arg0, %c0_i32, %c0_i32_0 : i32, i32, i32
  }
  func.func @transform_1(%arg0: i32) -> (i32, i32) {
    %c0_i32 = arith.constant 0 : i32
    %c0_i32_0 = arith.constant 0 : i32
    %c0_i32_1 = arith.constant 0 : i32
    return %c0_i32, %c0_i32_0 : i32, i32
  }
  func.func @transform_2(%arg0: i32) -> (i32, i32) {
    %c0_i32 = arith.constant 0 : i32
    %c0_i32_0 = arith.constant 0 : i32
    %c0_i32_1 = arith.constant 0 : i32
    return %c0_i32, %c0_i32_0 : i32, i32
  }
  func.func @transform_3(%arg0: i32) -> (i32, i32) {
    %c0_i32 = arith.constant 0 : i32
    %c0_i32_0 = arith.constant 0 : i32
    %c0_i32_1 = arith.constant 0 : i32
    return %c0_i32, %c0_i32_0 : i32, i32
  }
  func.func @transform_4(%arg0: i32) -> (i32, i32) {
    %c0_i32 = arith.constant 0 : i32
    %c0_i32_0 = arith.constant 0 : i32
    %c0_i32_1 = arith.constant 0 : i32
    return %c0_i32, %c0_i32_0 : i32, i32
  }
  func.func @transform_5(%arg0: i32) -> (i32, i32) {
    %c0_i32 = arith.constant 0 : i32
    %c0_i32_0 = arith.constant 0 : i32
    %c0_i32_1 = arith.constant 0 : i32
    return %c0_i32, %c0_i32_0 : i32, i32
  }
  func.func @transform_6(%arg0: i32) -> (i32, i32) {
    %c0_i32 = arith.constant 0 : i32
    %c0_i32_0 = arith.constant 0 : i32
    %c0_i32_1 = arith.constant 0 : i32
    return %c0_i32, %c0_i32_0 : i32, i32
  }
  func.func @transform_7(%arg0: i32) -> (i32, i32, i32) {
    %c0_i32 = arith.constant 0 : i32
    %c0_i32_0 = arith.constant 0 : i32
    %c0_i32_1 = arith.constant 0 : i32
    return %arg0, %c0_i32, %c0_i32_0 : i32, i32, i32
  }
}

</mosaic_0001>

<llo_original>
// kernel: tpu_custom_call.1
$region0: #{tpu_custom_call.1}
  #allocation0 [shape = 'u32[]', space=smem, size = 0x4, offset = 0x4, fixed_abs, tag = 'smem constant byte address 0x4 - core index']
  #allocation1 [shape = 'u32[144,128]{1,0:T(1,128)}', space=vmem, size = 0x12000, scoped, tag = 'internal scratch']
  %s0 = inlined_call_operand.hbm [shape: f32[2,32,128], index: 0, kind: input, shape index: {}]
  %s1 = inlined_call_operand.hbm [shape: f32[640,128], index: 1, kind: input, shape index: {}]
  %s2 = inlined_call_operand.vmem [shape: f32[1,128], index: 2, kind: input, shape index: {}]
  %s3 = inlined_call_operand.vmem [shape: f32[1,128], index: 3, kind: input, shape index: {}]
  %s4 = inlined_call_operand.hbm [shape: f32[640,128], index: 4, kind: input, shape index: {}]
  %s5 = inlined_call_operand.vmem [shape: f32[1,128], index: 5, kind: input, shape index: {}]
  %s6 = inlined_call_operand.vmem [shape: f32[1,128], index: 6, kind: input, shape index: {}]
  %s7 = inlined_call_operand.vmem [shape: f32[2,5,128], index: 7, kind: output, shape index: {}]
  %s8 = sld [smem:[#allocation0]]
  $region50: #{tpu_custom_call.1} parent=0
    _
  %s10 = ssub.s32 1, %s8
  %s11 = scalar_select 0, %s10, %s8
  $region1: #{tpu_custom_call.1} parent=0
    #allocation2 [shape = 'u8[32768]{0}', space=vmem, size = 0x8000, scoped, tag = 'input window, operand 0, single buffered']
    #allocation3 [shape = 's32[1]{0}', space=sflag, size = 0x4, scoped, tag = 'scoped memory for tpu_custom_call.1']
    #allocation4 [shape = 'u8[327680]{0}', space=vmem, size = 0x50000, scoped, tag = 'input window, operand 1, single buffered']
    #allocation5 [shape = 's32[1]{0}', space=sflag, size = 0x4, scoped, tag = 'scoped memory for tpu_custom_call.1']
    #allocation6 [shape = 'u8[327680]{0}', space=vmem, size = 0x50000, scoped, tag = 'input window, operand 4, single buffered']
    %12 = vsyncpa [#allocation3], 0
    %13 = vsyncpa [#allocation5], 0
    // Predicated region
    $region2: #{tpu_custom_call.1} parent=1 // pred_check
      _
    $region3: #{tpu_custom_call.1} parent=1 // pred_check_branch
      %15 = sbr.rel (0) target = $region5
    $region4: #{tpu_custom_call.1} parent=1 // pred_region
      %s17 = ssub.s32 1024, 1024
      %18 = vsyncadd [#allocation3], %s17
      %s19 = sshll.u32 [#allocation2], 4
      %s20 = int_to_ptr.vmem [resolvable:$true] %s19
      %25 = dma.hbm_to_vmem [thread:$0]  %s0, 1024, %s20, [#allocation3], 128, 128, 8
    $region5: #{tpu_custom_call.1} parent=1 // pred_fallthru
      _
    // Predicated region
    $region6: #{tpu_custom_call.1} parent=1 // pred_check
      _
    $region7: #{tpu_custom_call.1} parent=1 // pred_check_branch
      %27 = sbr.rel (0) target = $region9
    $region8: #{tpu_custom_call.1} parent=1 // pred_region
      %s29 = ssub.s32 10240, 10240
      %30 = vsyncadd [#allocation5], %s29
      %s31 = sshll.u32 [#allocation4], 4
      %s32 = int_to_ptr.vmem [resolvable:$true] %s31
      %37 = dma.hbm_to_vmem [thread:$0]  %s1, 10240, %s32, [#allocation5], 128, 128, 8
    $region9: #{tpu_custom_call.1} parent=1 // pred_fallthru
      _
    // Predicated region
    $region10: #{tpu_custom_call.1} parent=1 // pred_check
      _
    $region11: #{tpu_custom_call.1} parent=1 // pred_check_branch
      %39 = sbr.rel (0) target = $region13
    $region12: #{tpu_custom_call.1} parent=1 // pred_region
      _
    $region13: #{tpu_custom_call.1} parent=1 // pred_fallthru
      _
    // Predicated region
    $region14: #{tpu_custom_call.1} parent=1 // pred_check
      _
    $region15: #{tpu_custom_call.1} parent=1 // pred_check_branch
      %41 = sbr.rel (0) target = $region17
    $region16: #{tpu_custom_call.1} parent=1 // pred_region
      _
    $region17: #{tpu_custom_call.1} parent=1 // pred_fallthru
      _
    // Predicated region
    $region18: #{tpu_custom_call.1} parent=1 // pred_check
      _
    $region19: #{tpu_custom_call.1} parent=1 // pred_check_branch
      %43 = sbr.rel (0) target = $region21
    $region20: #{tpu_custom_call.1} parent=1 // pred_region
      %s45 = ssub.s32 10240, 10240
      %46 = vsyncadd [#allocation5], %s45
      %s47 = sshll.u32 [#allocation6], 4
      %s48 = int_to_ptr.vmem [resolvable:$true] %s47
      %53 = dma.hbm_to_vmem [thread:$0]  %s4, 10240, %s48, [#allocation5], 128, 128, 8
    $region21: #{tpu_custom_call.1} parent=1 // pred_fallthru
      _
    // Predicated region
    $region22: #{tpu_custom_call.1} parent=1 // pred_check
      _
    $region23: #{tpu_custom_call.1} parent=1 // pred_check_branch
      %55 = sbr.rel (0) target = $region25
    $region24: #{tpu_custom_call.1} parent=1 // pred_region
      _
    $region25: #{tpu_custom_call.1} parent=1 // pred_fallthru
      _
    // Predicated region
    $region26: #{tpu_custom_call.1} parent=1 // pred_check
      _
    $region27: #{tpu_custom_call.1} parent=1 // pred_check_branch
      %57 = sbr.rel (0) target = $region29
    $region28: #{tpu_custom_call.1} parent=1 // pred_region
      _
    $region29: #{tpu_custom_call.1} parent=1 // pred_fallthru
      _
    // Predicated region
    $region30: #{tpu_custom_call.1} parent=1 // pred_check
      _
    $region31: #{tpu_custom_call.1} parent=1 // pred_check_branch
      %59 = sbr.rel (0) target = $region33
    $region32: #{tpu_custom_call.1} parent=1 // pred_region
      %60 = dma.done [#allocation3], 1024
    $region33: #{tpu_custom_call.1} parent=1 // pred_fallthru
      _
    // Predicated region
    $region34: #{tpu_custom_call.1} parent=1 // pred_check
      _
    $region35: #{tpu_custom_call.1} parent=1 // pred_check_branch
      %62 = sbr.rel (0) target = $region37
    $region36: #{tpu_custom_call.1} parent=1 // pred_region
      %63 = dma.done [#allocation5], 10240
    $region37: #{tpu_custom_call.1} parent=1 // pred_fallthru
      _
    // Predicated region
    $region38: #{tpu_custom_call.1} parent=1 // pred_check
      _
    $region39: #{tpu_custom_call.1} parent=1 // pred_check_branch
      %65 = sbr.rel (0) target = $region41
    $region40: #{tpu_custom_call.1} parent=1 // pred_region
      %66 = dma.done [#allocation5], 10240
    $region41: #{tpu_custom_call.1} parent=1 // pred_fallthru
      _
    %v67 = vld [vmem:[#allocation2] sm:$0xff]
    %v68 = vld [vmem:[#allocation2 + $0x8] sm:$0xff]
    %v69 = vld [vmem:[#allocation2 + $0x10] sm:$0xff]
    %v70 = vld [vmem:[#allocation2 + $0x18] sm:$0xff]
    %v71 = vld [vmem:[#allocation2 + $0x20] sm:$0xff]
    %v72 = vld [vmem:[#allocation2 + $0x28] sm:$0xff]
    %v73 = vld [vmem:[#allocation2 + $0x30] sm:$0xff]
    %v74 = vld [vmem:[#allocation2 + $0x38] sm:$0xff]
    %vm83 = vcmask 1046528
    %v84 = vrot.slane %v67, 1
    %v85 = vrot.slane %v68, 1
    %v86 = vsel %vm83, %v84, %v85
    %v87 = vrot.slane %v69, 1
    %v88 = vsel %vm83, %v85, %v87
    %v89 = vrot.slane %v70, 1
    %v90 = vsel %vm83, %v87, %v89
    %v91 = vrot.slane %v71, 1
    %v92 = vrot.slane %v72, 1
    %v93 = vsel %vm83, %v91, %v92
    %v94 = vrot.slane %v73, 1
    %v95 = vsel %vm83, %v92, %v94
    %v96 = vrot.slane %v74, 1
    %v97 = vsel %vm83, %v94, %v96
    %vm98 = vcmask 1045504
    %v99 = vrot.slane %v67, 2
    %v100 = vrot.slane %v68, 2
    %v101 = vsel %vm98, %v99, %v100
    %v102 = vrot.slane %v69, 2
    %v103 = vsel %vm98, %v100, %v102
    %v104 = vrot.slane %v70, 2
    %v105 = vsel %vm98, %v102, %v104
    %v106 = vrot.slane %v71, 2
    %v107 = vrot.slane %v72, 2
    %v108 = vsel %vm98, %v106, %v107
    %v109 = vrot.slane %v73, 2
    %v110 = vsel %vm98, %v107, %v109
    %v111 = vrot.slane %v74, 2
    %v112 = vsel %vm98, %v109, %v111
    %vm113 = vcmask 1044480
    %v114 = vrot.slane %v67, 3
    %v115 = vrot.slane %v68, 3
    %v116 = vsel %vm113, %v114, %v115
    %v117 = vrot.slane %v69, 3
    %v118 = vsel %vm113, %v115, %v117
    %v119 = vrot.slane %v70, 3
    %v120 = vsel %vm113, %v117, %v119
    %v121 = vrot.slane %v71, 3
    %v122 = vrot.slane %v72, 3
    %v123 = vsel %vm113, %v121, %v122
    %v124 = vrot.slane %v73, 3
    %v125 = vsel %vm113, %v122, %v124
    %v126 = vrot.slane %v74, 3
    %v127 = vsel %vm113, %v124, %v126
    %vm128 = vcmask 1043456
    %v129 = vrot.slane %v67, 4
    %v130 = vrot.slane %v68, 4
    %v131 = vsel %vm128, %v129, %v130
    %v132 = vrot.slane %v69, 4
    %v133 = vsel %vm128, %v130, %v132
    %v134 = vrot.slane %v70, 4
    %v135 = vsel %vm128, %v132, %v134
    %v136 = vrot.slane %v71, 4
    %v137 = vrot.slane %v72, 4
    %v138 = vsel %vm128, %v136, %v137
    %v139 = vrot.slane %v73, 4
    %v140 = vsel %vm128, %v137, %v139
    %v141 = vrot.slane %v74, 4
    %v142 = vsel %vm128, %v139, %v141
    %v143 = vcombine.low %v67, %v86
    %v144 = vcombine.high %v67, %v86
    %v145 = vcombine.low %v101, %v116
    %v146 = vcombine.high %v101, %v116
    %v147 = vcombine.high %v131, %v131
    %v148 = vcombine.low %v68, %v88
    %v149 = vcombine.high %v68, %v88
    %v150 = vcombine.low %v103, %v118
    %v151 = vcombine.high %v103, %v118
    %v152 = vcombine.high %v133, %v133
    %v153 = vcombine.low %v69, %v90
    %v154 = vcombine.high %v69, %v90
    %v155 = vcombine.low %v105, %v120
    %v156 = vcombine.high %v105, %v120
    %v157 = vcombine.high %v135, %v135
    %v158 = vcombine.low %v70, %v89
    %v159 = vcombine.low %v104, %v119
    %v160 = vcombine.low %v71, %v93
    %v161 = vcombine.high %v71, %v93
    %v162 = vcombine.low %v108, %v123
    %v163 = vcombine.high %v108, %v123
    %v164 = vcombine.high %v138, %v138
    %v165 = vcombine.low %v72, %v95
    %v166 = vcombine.high %v72, %v95
    %v167 = vcombine.low %v110, %v125
    %v168 = vcombine.high %v110, %v125
    %v169 = vcombine.high %v140, %v140
    %v170 = vcombine.low %v73, %v97
    %v171 = vcombine.high %v73, %v97
    %v172 = vcombine.low %v112, %v127
    %v173 = vcombine.high %v112, %v127
    %v174 = vcombine.high %v142, %v142
    %v175 = vcombine.low %v74, %v96
    %v176 = vcombine.low %v111, %v126
    %v177 = vld [vmem:[#allocation4] sm:$0xff]
    %v178 = vld [vmem:[#allocation4 + $0x8] sm:$0xff]
    %v179 = vld [vmem:[#allocation4 + $0x10] sm:$0xff]
    %v180 = vld [vmem:[#allocation4 + $0x18] sm:$0xff]
    %v181 = vld [vmem:[#allocation4 + $0x20] sm:$0xff]
    %v182 = vld [vmem:[#allocation4 + $0x28] sm:$0xff]
    %v183 = vld [vmem:[#allocation4 + $0x30] sm:$0xff]
    %v184 = vld [vmem:[#allocation4 + $0x38] sm:$0xff]
    %v185 = vld [vmem:[#allocation4 + $0x40] sm:$0xff]
    %v186 = vld [vmem:[#allocation4 + $0x48] sm:$0xff]
    %v187 = vld [vmem:[#allocation4 + $0x50] sm:$0xff]
    %v188 = vld [vmem:[#allocation4 + $0x58] sm:$0xff]
    %v189 = vld [vmem:[#allocation4 + $0x60] sm:$0xff]
    %v190 = vld [vmem:[#allocation4 + $0x68] sm:$0xff]
    %v191 = vld [vmem:[#allocation4 + $0x70] sm:$0xff]
    %v192 = vld [vmem:[#allocation4 + $0x78] sm:$0xff]
    %v193 = vld [vmem:[#allocation4 + $0x80] sm:$0xff]
    %v194 = vld [vmem:[#allocation4 + $0x88] sm:$0xff]
    %v195 = vld [vmem:[#allocation4 + $0x90] sm:$0xff]
    %v196 = vld [vmem:[#allocation4 + $0x98] sm:$0xff]
    %v197 = vld [vmem:[#allocation4 + $0xa0] sm:$0xff]
    %v198 = vld [vmem:[#allocation4 + $0xa8] sm:$0xff]
    %v199 = vld [vmem:[#allocation4 + $0xb0] sm:$0xff]
    %v200 = vld [vmem:[#allocation4 + $0xb8] sm:$0xff]
    %v201 = vld [vmem:[#allocation4 + $0xc0] sm:$0xff]
    %v202 = vld [vmem:[#allocation4 + $0xc8] sm:$0xff]
    %v203 = vld [vmem:[#allocation4 + $0xd0] sm:$0xff]
    %v204 = vld [vmem:[#allocation4 + $0xd8] sm:$0xff]
    %v205 = vld [vmem:[#allocation4 + $0xe0] sm:$0xff]
    %v206 = vld [vmem:[#allocation4 + $0xe8] sm:$0xff]
    %v207 = vld [vmem:[#allocation4 + $0xf0] sm:$0xff]
    %v208 = vld [vmem:[#allocation4 + $0xf8] sm:$0xff]
    %v209 = vld [vmem:[#allocation4 + $0x100] sm:$0xff]
    %v210 = vld [vmem:[#allocation4 + $0x108] sm:$0xff]
    %v211 = vld [vmem:[#allocation4 + $0x110] sm:$0xff]
    %v212 = vld [vmem:[#allocation4 + $0x118] sm:$0xff]
    %v213 = vld [vmem:[#allocation4 + $0x120] sm:$0xff]
    %v214 = vld [vmem:[#allocation4 + $0x128] sm:$0xff]
    %v215 = vld [vmem:[#allocation4 + $0x130] sm:$0xff]
    %v216 = vld [vmem:[#allocation4 + $0x138] sm:$0xff]
    %v217 = vld [vmem:[#allocation4 + $0x140] sm:$0xff]
    %v218 = vld [vmem:[#allocation4 + $0x148] sm:$0xff]
    %v219 = vld [vmem:[#allocation4 + $0x150] sm:$0xff]
    %v220 = vld [vmem:[#allocation4 + $0x158] sm:$0xff]
    %v221 = vld [vmem:[#allocation4 + $0x160] sm:$0xff]
    %v222 = vld [vmem:[#allocation4 + $0x168] sm:$0xff]
    %v223 = vld [vmem:[#allocation4 + $0x170] sm:$0xff]
    %v224 = vld [vmem:[#allocation4 + $0x178] sm:$0xff]
    %v225 = vld [vmem:[#allocation4 + $0x180] sm:$0xff]
    %v226 = vld [vmem:[#allocation4 + $0x188] sm:$0xff]
    %v227 = vld [vmem:[#allocation4 + $0x190] sm:$0xff]
    %v228 = vld [vmem:[#allocation4 + $0x198] sm:$0xff]
    %v229 = vld [vmem:[#allocation4 + $0x1a0] sm:$0xff]
    %v230 = vld [vmem:[#allocation4 + $0x1a8] sm:$0xff]
    %v231 = vld [vmem:[#allocation4 + $0x1b0] sm:$0xff]
    %v232 = vld [vmem:[#allocation4 + $0x1b8] sm:$0xff]
    %v233 = vld [vmem:[#allocation4 + $0x1c0] sm:$0xff]
    %v234 = vld [vmem:[#allocation4 + $0x1c8] sm:$0xff]
    %v235 = vld [vmem:[#allocation4 + $0x1d0] sm:$0xff]
    %v236 = vld [vmem:[#allocation4 + $0x1d8] sm:$0xff]
    %v237 = vld [vmem:[#allocation4 + $0x1e0] sm:$0xff]
    %v238 = vld [vmem:[#allocation4 + $0x1e8] sm:$0xff]
    %v239 = vld [vmem:[#allocation4 + $0x1f0] sm:$0xff]
    %v240 = vld [vmem:[#allocation4 + $0x1f8] sm:$0xff]
    %v241 = vld [vmem:[#allocation4 + $0x200] sm:$0xff]
    %v242 = vld [vmem:[#allocation4 + $0x208] sm:$0xff]
    %v243 = vld [vmem:[#allocation4 + $0x210] sm:$0xff]
    %v244 = vld [vmem:[#allocation4 + $0x218] sm:$0xff]
    %v245 = vld [vmem:[#allocation4 + $0x220] sm:$0xff]
    %v246 = vld [vmem:[#allocation4 + $0x228] sm:$0xff]
    %v247 = vld [vmem:[#allocation4 + $0x230] sm:$0xff]
    %v248 = vld [vmem:[#allocation4 + $0x238] sm:$0xff]
    %v249 = vld [vmem:[#allocation4 + $0x240] sm:$0xff]
    %v250 = vld [vmem:[#allocation4 + $0x248] sm:$0xff]
    %v251 = vld [vmem:[#allocation4 + $0x250] sm:$0xff]
    %v252 = vld [vmem:[#allocation4 + $0x258] sm:$0xff]
    %v253 = vld [vmem:[#allocation4 + $0x260] sm:$0xff]
    %v254 = vld [vmem:[#allocation4 + $0x268] sm:$0xff]
    %v255 = vld [vmem:[#allocation4 + $0x270] sm:$0xff]
    %v256 = vld [vmem:[#allocation4 + $0x278] sm:$0xff]
    %v257 = vcombine.low %v143, %v144
    %v258 = vcombine.high %v143, %v144
    %v259 = vcombine.low %v145, %v146
    %v260 = vcombine.high %v145, %v146
    %v261 = vcombine.low %v131, %v147
    %v262 = vcombine.low %v148, %v149
    %v263 = vcombine.high %v148, %v149
    %v264 = vcombine.low %v150, %v151
    %v265 = vcombine.high %v150, %v151
    %v266 = vcombine.low %v133, %v152
    %v267 = vcombine.low %v153, %v154
    %v268 = vcombine.high %v153, %v154
    %v269 = vcombine.low %v155, %v156
    %v270 = vcombine.high %v155, %v156
    %v271 = vcombine.low %v135, %v157
    %v272 = vcombine.low %v158, %v160
    %v273 = vcombine.high %v158, %v160
    %v274 = vcombine.low %v159, %v162
    %v275 = vcombine.high %v159, %v162
    %v276 = vcombine.low %v134, %v138
    %v277 = vcombine.low %v161, %v165
    %v278 = vcombine.high %v161, %v165
    %v279 = vcombine.low %v163, %v167
    %v280 = vcombine.high %v163, %v167
    %v281 = vcombine.low %v164, %v140
    %v282 = vcombine.low %v166, %v170
    %v283 = vcombine.high %v166, %v170
    %v284 = vcombine.low %v168, %v172
    %v285 = vcombine.high %v168, %v172
    %v286 = vcombine.low %v169, %v142
    %v287 = vcombine.low %v171, %v175
    %v288 = vcombine.high %v171, %v175
    %v289 = vcombine.low %v173, %v176
    %v290 = vcombine.high %v173, %v176
    %v291 = vcombine.low %v174, %v141
    %327 = vmatprep.subr.mxu0 0.0
    %328 = vmatpush1.msra.mxu0 %v177
    %329 = vmatprep.subr.mxu0 0.0
    %330 = vmatpush1.msra.mxu0 %v178
    %331 = vmatprep.subr.mxu0 0.0
    %332 = vmatpush1.msra.mxu0 %v179
    %333 = vmatprep.subr.mxu0 0.0
    %334 = vmatpush1.msra.mxu0 %v180
    %335 = vmatprep.subr.mxu0 0.0
    %336 = vmatpush1.msra.mxu0 %v181
    %337 = vmatprep.subr.mxu0 0.0
    %338 = vmatpush1.msra.mxu0 %v182
    %339 = vmatprep.subr.mxu0 0.0
    %340 = vmatpush1.msra.mxu0 %v183
    %341 = vmatprep.subr.mxu0 0.0
    %342 = vmatpush1.msra.mxu0 %v184
    %343 = vmatprep.subr.mxu0 0.0
    %344 = vmatpush1.msra.mxu0 %v185
    %345 = vmatprep.subr.mxu0 0.0
    %346 = vmatpush1.msra.mxu0 %v186
    %347 = vmatprep.subr.mxu0 0.0
    %348 = vmatpush1.msra.mxu0 %v187
    %349 = vmatprep.subr.mxu0 0.0
    %350 = vmatpush1.msra.mxu0 %v188
    %351 = vmatprep.subr.mxu0 0.0
    %352 = vmatpush1.msra.mxu0 %v189
    %353 = vmatprep.subr.mxu0 0.0
    %354 = vmatpush1.msra.mxu0 %v190
    %355 = vmatprep.subr.mxu0 0.0
    %356 = vmatpush1.msra.mxu0 %v191
    %357 = vmatprep.subr.mxu0 0.0
    %358 = vmatpush1.msra.mxu0 %v192
    %359 = vmatprep.subr.mxu0 0.0
    %360 = vmatpush1.msra.mxu0 %v193
    %361 = vmatprep.subr.mxu0 0.0
    %362 = vmatpush1.msra.mxu0 %v194
    %363 = vmatprep.subr.mxu0 0.0
    %364 = vmatpush1.msra.mxu0 %v195
    %365 = vmatprep.subr.mxu0 0.0
    %366 = vmatpush1.msra.mxu0 %v196
    %367 = vmatprep.subr.mxu0 0.0
    %368 = vmatpush1.msra.mxu0 %v197
    %369 = vmatprep.subr.mxu0 0.0
    %370 = vmatpush1.msra.mxu0 %v198
    %371 = vmatprep.subr.mxu0 0.0
    %372 = vmatpush1.msra.mxu0 %v199
    %373 = vmatprep.subr.mxu0 0.0
    %374 = vmatpush1.msra.mxu0 %v200
    %375 = vmatprep.subr.mxu0 0.0
    %376 = vmatpush1.msra.mxu0 %v201
    %377 = vmatprep.subr.mxu0 0.0
    %378 = vmatpush1.msra.mxu0 %v202
    %379 = vmatprep.subr.mxu0 0.0
    %380 = vmatpush1.msra.mxu0 %v203
    %381 = vmatprep.subr.mxu0 0.0
    %382 = vmatpush1.msra.mxu0 %v204
    %383 = vmatprep.subr.mxu0 0.0
    %384 = vmatpush1.msra.mxu0 %v205
    %385 = vmatprep.subr.mxu0 0.0
    %386 = vmatpush1.msra.mxu0 %v206
    %387 = vmatprep.subr.mxu0 0.0
    %388 = vmatpush1.msra.mxu0 %v207
    %389 = vmatprep.subr.mxu0 0.0
    %390 = vmatpush1.msra.mxu0 %v208
    %391 = vmatprep.mubr.f32.mxu0 %v258
    %392 = vmatmul.mubr.f32.gmra.mrb[0].mxu0 %v257
    %v393 = vpop.f32.mrb[0].mxu0
    %v394 = vadd.f32 0.0, %v393
    %v395 = vpop.f32.mrb[0].mxu0
    %396 = vmatprep.mubr.f32.mxu0 %v263
    %397 = vmatmul.mubr.f32.gmra.mrb[0].mxu0 %v262
    %v398 = vpop.f32.mrb[0].mxu0
    %v399 = vadd.f32 0.0, %v398
    %v400 = vpop.f32.mrb[0].mxu0
    %401 = vmatprep.mubr.f32.mxu0 %v268
    %402 = vmatmul.mubr.f32.gmra.mrb[0].mxu0 %v267
    %v403 = vpop.f32.mrb[0].mxu0
    %v404 = vadd.f32 0.0, %v403
    %v405 = vpop.f32.mrb[0].mxu0
    %406 = vmatprep.mubr.f32.mxu0 %v273
    %407 = vmatmul.mubr.f32.gmra.mrb[0].mxu0 %v272
    %v408 = vpop.f32.mrb[0].mxu0
    %v409 = vadd.f32 0.0, %v408
    %v410 = vpop.f32.mrb[0].mxu0
    %411 = vmatprep.mubr.f32.mxu0 %v278
    %412 = vmatmul.mubr.f32.gmra.mrb[0].mxu0 %v277
    %v413 = vpop.f32.mrb[0].mxu0
    %v414 = vadd.f32 0.0, %v413
    %v415 = vpop.f32.mrb[0].mxu0
    %416 = vmatprep.mubr.f32.mxu0 %v283
    %417 = vmatmul.mubr.f32.gmra.mrb[0].mxu0 %v282
    %v418 = vpop.f32.mrb[0].mxu0
    %v419 = vadd.f32 0.0, %v418
    %v420 = vpop.f32.mrb[0].mxu0
    %421 = vmatprep.mubr.f32.mxu0 %v288
    %422 = vmatmul.mubr.f32.gmra.mrb[0].mxu0 %v287
    %v423 = vpop.f32.mrb[0].mxu0
    %v424 = vadd.f32 0.0, %v423
    %v425 = vpop.f32.mrb[0].mxu0
    %426 = vdwg.mxu0
    %427 = vmatprep.subr.mxu0 0.0
    %428 = vmatpush1.msra.mxu0 %v209
    %429 = vmatprep.subr.mxu0 0.0
    %430 = vmatpush1.msra.mxu0 %v210
    %431 = vmatprep.subr.mxu0 0.0
    %432 = vmatpush1.msra.mxu0 %v211
    %433 = vmatprep.subr.mxu0 0.0
    %434 = vmatpush1.msra.mxu0 %v212
    %435 = vmatprep.subr.mxu0 0.0
    %436 = vmatpush1.msra.mxu0 %v213
    %437 = vmatprep.subr.mxu0 0.0
    %438 = vmatpush1.msra.mxu0 %v214
    %439 = vmatprep.subr.mxu0 0.0
    %440 = vmatpush1.msra.mxu0 %v215
    %441 = vmatprep.subr.mxu0 0.0
    %442 = vmatpush1.msra.mxu0 %v216
    %443 = vmatprep.subr.mxu0 0.0
    %444 = vmatpush1.msra.mxu0 %v217
    %445 = vmatprep.subr.mxu0 0.0
    %446 = vmatpush1.msra.mxu0 %v218
    %447 = vmatprep.subr.mxu0 0.0
    %448 = vmatpush1.msra.mxu0 %v219
    %449 = vmatprep.subr.mxu0 0.0
    %450 = vmatpush1.msra.mxu0 %v220
    %451 = vmatprep.subr.mxu0 0.0
    %452 = vmatpush1.msra.mxu0 %v221
    %453 = vmatprep.subr.mxu0 0.0
    %454 = vmatpush1.msra.mxu0 %v222
    %455 = vmatprep.subr.mxu0 0.0
    %456 = vmatpush1.msra.mxu0 %v223
    %457 = vmatprep.subr.mxu0 0.0
    %458 = vmatpush1.msra.mxu0 %v224
    %459 = vmatprep.subr.mxu0 0.0
    %460 = vmatpush1.msra.mxu0 %v225
    %461 = vmatprep.subr.mxu0 0.0
    %462 = vmatpush1.msra.mxu0 %v226
    %463 = vmatprep.subr.mxu0 0.0
    %464 = vmatpush1.msra.mxu0 %v227
    %465 = vmatprep.subr.mxu0 0.0
    %466 = vmatpush1.msra.mxu0 %v228
    %467 = vmatprep.subr.mxu0 0.0
    %468 = vmatpush1.msra.mxu0 %v229
    %469 = vmatprep.subr.mxu0 0.0
    %470 = vmatpush1.msra.mxu0 %v230
    %471 = vmatprep.subr.mxu0 0.0
    %472 = vmatpush1.msra.mxu0 %v231
    %473 = vmatprep.subr.mxu0 0.0
    %474 = vmatpush1.msra.mxu0 %v232
    %475 = vmatprep.subr.mxu0 0.0
    %476 = vmatpush1.msra.mxu0 %v233
    %477 = vmatprep.subr.mxu0 0.0
    %478 = vmatpush1.msra.mxu0 %v234
    %479 = vmatprep.subr.mxu0 0.0
    %480 = vmatpush1.msra.mxu0 %v235
    %481 = vmatprep.subr.mxu0 0.0
    %482 = vmatpush1.msra.mxu0 %v236
    %483 = vmatprep.subr.mxu0 0.0
    %484 = vmatpush1.msra.mxu0 %v237
    %485 = vmatprep.subr.mxu0 0.0
    %486 = vmatpush1.msra.mxu0 %v238
    %487 = vmatprep.subr.mxu0 0.0
    %488 = vmatpush1.msra.mxu0 %v239
    %489 = vmatprep.subr.mxu0 0.0
    %490 = vmatpush1.msra.mxu0 %v240
    %491 = vmatprep.mubr.f32.mxu0 %v260
    %492 = vmatmul.mubr.f32.gmra.mrb[0].mxu0 %v259
    %v493 = vpop.f32.mrb[0].mxu0
    %v494 = vadd.f32 %v394, %v493
    %v495 = vpop.f32.mrb[0].mxu0
    %496 = vmatprep.mubr.f32.mxu0 %v265
    %497 = vmatmul.mubr.f32.gmra.mrb[0].mxu0 %v264
    %v498 = vpop.f32.mrb[0].mxu0
    %v499 = vadd.f32 %v399, %v498
    %v500 = vpop.f32.mrb[0].mxu0
    %501 = vmatprep.mubr.f32.mxu0 %v270
    %502 = vmatmul.mubr.f32.gmra.mrb[0].mxu0 %v269
    %v503 = vpop.f32.mrb[0].mxu0
    %v504 = vadd.f32 %v404, %v503
    %v505 = vpop.f32.mrb[0].mxu0
    %506 = vmatprep.mubr.f32.mxu0 %v275
    %507 = vmatmul.mubr.f32.gmra.mrb[0].mxu0 %v274
    %v508 = vpop.f32.mrb[0].mxu0
    %v509 = vadd.f32 %v409, %v508
    %v510 = vpop.f32.mrb[0].mxu0
    %511 = vmatprep.mubr.f32.mxu0 %v280
    %512 = vmatmul.mubr.f32.gmra.mrb[0].mxu0 %v279
    %v513 = vpop.f32.mrb[0].mxu0
    %v514 = vadd.f32 %v414, %v513
    %v515 = vpop.f32.mrb[0].mxu0
    %516 = vmatprep.mubr.f32.mxu0 %v285
    %517 = vmatmul.mubr.f32.gmra.mrb[0].mxu0 %v284
    %v518 = vpop.f32.mrb[0].mxu0
    %v519 = vadd.f32 %v419, %v518
    %v520 = vpop.f32.mrb[0].mxu0
    %521 = vmatprep.mubr.f32.mxu0 %v290
    %522 = vmatmul.mubr.f32.gmra.mrb[0].mxu0 %v289
    %v523 = vpop.f32.mrb[0].mxu0
    %v524 = vadd.f32 %v424, %v523
    %v525 = vpop.f32.mrb[0].mxu0
    %526 = vdwg.mxu0
    %527 = vmatprep.subr.mxu0 0.0
    %528 = vmatpush1.msra.mxu0 %v241
    %529 = vmatprep.subr.mxu0 0.0
    %530 = vmatpush1.msra.mxu0 %v242
    %531 = vmatprep.subr.mxu0 0.0
    %532 = vmatpush1.msra.mxu0 %v243
    %533 = vmatprep.subr.mxu0 0.0
    %534 = vmatpush1.msra.mxu0 %v244
    %535 = vmatprep.subr.mxu0 0.0
    %536 = vmatpush1.msra.mxu0 %v245
    %537 = vmatprep.subr.mxu0 0.0
    %538 = vmatpush1.msra.mxu0 %v246
    %539 = vmatprep.subr.mxu0 0.0
    %540 = vmatpush1.msra.mxu0 %v247
    %541 = vmatprep.subr.mxu0 0.0
    %542 = vmatpush1.msra.mxu0 %v248
    %543 = vmatprep.subr.mxu0 0.0
    %544 = vmatpush1.msra.mxu0 %v249
    %545 = vmatprep.subr.mxu0 0.0
    %546 = vmatpush1.msra.mxu0 %v250
    %547 = vmatprep.subr.mxu0 0.0
    %548 = vmatpush1.msra.mxu0 %v251
    %549 = vmatprep.subr.mxu0 0.0
    %550 = vmatpush1.msra.mxu0 %v252
    %551 = vmatprep.subr.mxu0 0.0
    %552 = vmatpush1.msra.mxu0 %v253
    %553 = vmatprep.subr.mxu0 0.0
    %554 = vmatpush1.msra.mxu0 %v254
    %555 = vmatprep.subr.mxu0 0.0
    %556 = vmatpush1.msra.mxu0 %v255
    %557 = vmatprep.subr.mxu0 0.0
    %558 = vmatpush1.msra.mxu0 %v256
    %559 = vmatprep.subr.mxu0 0.0
    %560 = vmatpush1.msra.mxu0 0.0
    %561 = vmatprep.subr.mxu0 0.0
    %562 = vmatpush1.msra.mxu0 0.0
    %563 = vmatprep.subr.mxu0 0.0
    %564 = vmatpush1.msra.mxu0 0.0
    %565 = vmatprep.subr.mxu0 0.0
    %566 = vmatpush1.msra.mxu0 0.0
    %567 = vmatprep.subr.mxu0 0.0
    %568 = vmatpush1.msra.mxu0 0.0
    %569 = vmatprep.subr.mxu0 0.0
    %570 = vmatpush1.msra.mxu0 0.0
    %571 = vmatprep.subr.mxu0 0.0
    %572 = vmatpush1.msra.mxu0 0.0
    %573 = vmatprep.subr.mxu0 0.0
    %574 = vmatpush1.msra.mxu0 0.0
    %575 = vmatprep.subr.mxu0 0.0
    %576 = vmatpush1.msra.mxu0 0.0
    %577 = vmatprep.subr.mxu0 0.0
    %578 = vmatpush1.msra.mxu0 0.0
    %579 = vmatprep.subr.mxu0 0.0
    %580 = vmatpush1.msra.mxu0 0.0
    %581 = vmatprep.subr.mxu0 0.0
    %582 = vmatpush1.msra.mxu0 0.0
    %583 = vmatprep.subr.mxu0 0.0
    %584 = vmatpush1.msra.mxu0 0.0
    %585 = vmatprep.subr.mxu0 0.0
    %586 = vmatpush1.msra.mxu0 0.0
    %587 = vmatprep.subr.mxu0 0.0
    %588 = vmatpush1.msra.mxu0 0.0
    %589 = vmatprep.subr.mxu0 0.0
    %590 = vmatpush1.msra.mxu0 0.0
    %591 = vmatprep.mubr.f32.mxu0 0.0
    %592 = vmatmul.mubr.f32.gmra.mrb[0].mxu0 %v261
    %v593 = vpop.f32.mrb[0].mxu0
    %v594 = vadd.f32 %v494, %v593
    %v595 = vpop.f32.mrb[0].mxu0
    %596 = vmatprep.mubr.f32.mxu0 0.0
    %597 = vmatmul.mubr.f32.gmra.mrb[0].mxu0 %v266
    %v598 = vpop.f32.mrb[0].mxu0
    %v599 = vadd.f32 %v499, %v598
    %v600 = vpop.f32.mrb[0].mxu0
    %601 = vmatprep.mubr.f32.mxu0 0.0
    %602 = vmatmul.mubr.f32.gmra.mrb[0].mxu0 %v271
    %v603 = vpop.f32.mrb[0].mxu0
    %v604 = vadd.f32 %v504, %v603
    %v605 = vpop.f32.mrb[0].mxu0
    %606 = vmatprep.mubr.f32.mxu0 0.0
    %607 = vmatmul.mubr.f32.gmra.mrb[0].mxu0 %v276
    %v608 = vpop.f32.mrb[0].mxu0
    %v609 = vadd.f32 %v509, %v608
    %v610 = vpop.f32.mrb[0].mxu0
    %611 = vmatprep.mubr.f32.mxu0 0.0
    %612 = vmatmul.mubr.f32.gmra.mrb[0].mxu0 %v281
    %v613 = vpop.f32.mrb[0].mxu0
    %v614 = vadd.f32 %v514, %v613
    %v615 = vpop.f32.mrb[0].mxu0
    %616 = vmatprep.mubr.f32.mxu0 0.0
    %617 = vmatmul.mubr.f32.gmra.mrb[0].mxu0 %v286
    %v618 = vpop.f32.mrb[0].mxu0
    %v619 = vadd.f32 %v519, %v618
    %v620 = vpop.f32.mrb[0].mxu0
    %621 = vmatprep.mubr.f32.mxu0 0.0
    %622 = vmatmul.mubr.f32.gmra.mrb[0].mxu0 %v291
    %v623 = vpop.f32.mrb[0].mxu0
    %v624 = vadd.f32 %v524, %v623
    %v625 = vpop.f32.mrb[0].mxu0
    %626 = vdwg.mxu0
    %v627 = vld [vmem:[%s2] sm:$0x1]
    %v629 = vlaneseq
    %v630 = vshrl.u32 %v629, 7
    %v631 = vsub.s32 0, %v630
    %v632 = vrot.slane %v627, %v631
    %v634 = vmul.f32 %v594, %v632
    %v635 = vmul.f32 %v599, %v632
    %v636 = vmul.f32 %v604, %v632
    %v637 = vmul.f32 %v609, %v632
    %v638 = vmul.f32 %v614, %v632
    %v639 = vmul.f32 %v619, %v632
    %v640 = vmul.f32 %v624, %v632
    %v641 = vld [vmem:[%s3] sm:$0x1]
    %v643 = vlaneseq
    %v644 = vshrl.u32 %v643, 7
    %v645 = vsub.s32 0, %v644
    %v646 = vrot.slane %v641, %v645
    %v648 = vadd.f32 %v634, %v646
    %v649 = vadd.f32 %v635, %v646
    %v650 = vadd.f32 %v636, %v646
    %v651 = vadd.f32 %v637, %v646
    %v652 = vadd.f32 %v638, %v646
    %v653 = vadd.f32 %v639, %v646
    %v654 = vadd.f32 %v640, %v646
    %v655 = vmax.f32 %v648, 0.0
    %v656 = vmax.f32 %v649, 0.0
    %v657 = vmax.f32 %v650, 0.0
    %v658 = vmax.f32 %v651, 0.0
    %v659 = vmax.f32 %v652, 0.0
    %v660 = vmax.f32 %v653, 0.0
    %v661 = vmax.f32 %v654, 0.0
    %v669 = vcombine.high %v655, %v655
    %v671 = vunpack.c.l.s4 1983009808
    %v672 = vunpack.c.0.s8 %v671
    %v673 = vlaneseq
    %v674 = vshrl.u32 %v673, 7
    %v675 = vsub.s32 %v672, %v674
    %v676 = vrot.slane %v655, %v675
    %v678 = vunpack.c.l.s4 1983009808
    %v679 = vunpack.c.0.s8 %v678
    %v680 = vlaneseq
    %v681 = vshrl.u32 %v680, 7
    %v682 = vsub.s32 %v679, %v681
    %v683 = vrot.slane %v669, %v682
    %v684 = vcombine.high %v676, %v676
    %v685 = vcombine.high %v683, %v683
    %v686 = vcombine.high %v656, %v656
    %v688 = vunpack.c.l.s4 1983009808
    %v689 = vunpack.c.0.s8 %v688
    %v690 = vlaneseq
    %v691 = vshrl.u32 %v690, 7
    %v692 = vsub.s32 %v689, %v691
    %v693 = vrot.slane %v656, %v692
    %v695 = vunpack.c.l.s4 1983009808
    %v696 = vunpack.c.0.s8 %v695
    %v697 = vlaneseq
    %v698 = vshrl.u32 %v697, 7
    %v699 = vsub.s32 %v696, %v698
    %v700 = vrot.slane %v686, %v699
    %v701 = vcombine.high %v693, %v693
    %v702 = vcombine.high %v700, %v700
    %v703 = vcombine.high %v657, %v657
    %v705 = vunpack.c.l.s4 1983009808
    %v706 = vunpack.c.0.s8 %v705
    %v707 = vlaneseq
    %v708 = vshrl.u32 %v707, 7
    %v709 = vsub.s32 %v706, %v708
    %v710 = vrot.slane %v657, %v709
    %v712 = vunpack.c.l.s4 1983009808
    %v713 = vunpack.c.0.s8 %v712
    %v714 = vlaneseq
    %v715 = vshrl.u32 %v714, 7
    %v716 = vsub.s32 %v713, %v715
    %v717 = vrot.slane %v703, %v716
    %v718 = vcombine.high %v710, %v710
    %v719 = vcombine.high %v717, %v717
    %v720 = vcombine.high %v658, %v658
    %v722 = vunpack.c.l.s4 1983009808
    %v723 = vunpack.c.0.s8 %v722
    %v724 = vlaneseq
    %v725 = vshrl.u32 %v724, 7
    %v726 = vsub.s32 %v723, %v725
    %v727 = vrot.slane %v658, %v726
    %v729 = vunpack.c.l.s4 1983009808
    %v730 = vunpack.c.0.s8 %v729
    %v731 = vlaneseq
    %v732 = vshrl.u32 %v731, 7
    %v733 = vsub.s32 %v730, %v732
    %v734 = vrot.slane %v720, %v733
    %v735 = vcombine.high %v727, %v727
    %v736 = vcombine.high %v734, %v734
    %v737 = vcombine.high %v659, %v659
    %v739 = vunpack.c.l.s4 1983009808
    %v740 = vunpack.c.0.s8 %v739
    %v741 = vlaneseq
    %v742 = vshrl.u32 %v741, 7
    %v743 = vsub.s32 %v740, %v742
    %v744 = vrot.slane %v659, %v743
    %v746 = vunpack.c.l.s4 1983009808
    %v747 = vunpack.c.0.s8 %v746
    %v748 = vlaneseq
    %v749 = vshrl.u32 %v748, 7
    %v750 = vsub.s32 %v747, %v749
    %v751 = vrot.slane %v737, %v750
    %v752 = vcombine.high %v744, %v744
    %v753 = vcombine.high %v751, %v751
    %v754 = vcombine.high %v660, %v660
    %v756 = vunpack.c.l.s4 1983009808
    %v757 = vunpack.c.0.s8 %v756
    %v758 = vlaneseq
    %v759 = vshrl.u32 %v758, 7
    %v760 = vsub.s32 %v757, %v759
    %v761 = vrot.slane %v660, %v760
    %v763 = vunpack.c.l.s4 1983009808
    %v764 = vunpack.c.0.s8 %v763
    %v765 = vlaneseq
    %v766 = vshrl.u32 %v765, 7
    %v767 = vsub.s32 %v764, %v766
    %v768 = vrot.slane %v754, %v767
    %v769 = vcombine.high %v761, %v761
    %v770 = vcombine.high %v768, %v768
    %v771 = vcombine.high %v661, %v661
    %v773 = vunpack.c.l.s4 1983009808
    %v774 = vunpack.c.0.s8 %v773
    %v775 = vlaneseq
    %v776 = vshrl.u32 %v775, 7
    %v777 = vsub.s32 %v774, %v776
    %v778 = vrot.slane %v661, %v777
    %v780 = vunpack.c.l.s4 1983009808
    %v781 = vunpack.c.0.s8 %v780
    %v782 = vlaneseq
    %v783 = vshrl.u32 %v782, 7
    %v784 = vsub.s32 %v781, %v783
    %v785 = vrot.slane %v771, %v784
    %v786 = vcombine.high %v778, %v778
    %v787 = vcombine.high %v785, %v785
    %vm816 = vcmask 1041408
    %v817 = vsel %vm816, %v676, -inf
    %v818 = vrot.slane %v817, 4
    %v819 = vmax.f32 %v817, %v818
    %v820 = vrot.slane %v819, 2
    %v821 = vmax.f32 %v819, %v820
    %v822 = vrot.slane %v821, 1
    %v823 = vmax.f32 %v821, %v822
    %v824 = vsel %vm816, %v684, -inf
    %v825 = vrot.slane %v824, 4
    %v826 = vmax.f32 %v824, %v825
    %v827 = vrot.slane %v826, 2
    %v828 = vmax.f32 %v826, %v827
    %v829 = vrot.slane %v828, 1
    %v830 = vmax.f32 %v828, %v829
    %v831 = vsel %vm816, %v683, -inf
    %v832 = vrot.slane %v831, 4
    %v833 = vmax.f32 %v831, %v832
    %v834 = vrot.slane %v833, 2
    %v835 = vmax.f32 %v833, %v834
    %v836 = vrot.slane %v835, 1
    %v837 = vmax.f32 %v835, %v836
    %v838 = vsel %vm816, %v685, -inf
    %v839 = vrot.slane %v838, 4
    %v840 = vmax.f32 %v838, %v839
    %v841 = vrot.slane %v840, 2
    %v842 = vmax.f32 %v840, %v841
    %v843 = vrot.slane %v842, 1
    %v844 = vmax.f32 %v842, %v843
    %v845 = vsel %vm816, %v693, -inf
    %v846 = vrot.slane %v845, 4
    %v847 = vmax.f32 %v845, %v846
    %v848 = vrot.slane %v847, 2
    %v849 = vmax.f32 %v847, %v848
    %v850 = vrot.slane %v849, 1
    %v851 = vmax.f32 %v849, %v850
    %v852 = vsel %vm816, %v701, -inf
    %v853 = vrot.slane %v852, 4
    %v854 = vmax.f32 %v852, %v853
    %v855 = vrot.slane %v854, 2
    %v856 = vmax.f32 %v854, %v855
    %v857 = vrot.slane %v856, 1
    %v858 = vmax.f32 %v856, %v857
    %v859 = vsel %vm816, %v700, -inf
    %v860 = vrot.slane %v859, 4
    %v861 = vmax.f32 %v859, %v860
    %v862 = vrot.slane %v861, 2
    %v863 = vmax.f32 %v861, %v862
    %v864 = vrot.slane %v863, 1
    %v865 = vmax.f32 %v863, %v864
    %v866 = vsel %vm816, %v702, -inf
    %v867 = vrot.slane %v866, 4
    %v868 = vmax.f32 %v866, %v867
    %v869 = vrot.slane %v868, 2
    %v870 = vmax.f32 %v868, %v869
    %v871 = vrot.slane %v870, 1
    %v872 = vmax.f32 %v870, %v871
    %v873 = vsel %vm816, %v710, -inf
    %v874 = vrot.slane %v873, 4
    %v875 = vmax.f32 %v873, %v874
    %v876 = vrot.slane %v875, 2
    %v877 = vmax.f32 %v875, %v876
    %v878 = vrot.slane %v877, 1
    %v879 = vmax.f32 %v877, %v878
    %v880 = vsel %vm816, %v718, -inf
    %v881 = vrot.slane %v880, 4
    %v882 = vmax.f32 %v880, %v881
    %v883 = vrot.slane %v882, 2
    %v884 = vmax.f32 %v882, %v883
    %v885 = vrot.slane %v884, 1
    %v886 = vmax.f32 %v884, %v885
    %v887 = vsel %vm816, %v717, -inf
    %v888 = vrot.slane %v887, 4
    %v889 = vmax.f32 %v887, %v888
    %v890 = vrot.slane %v889, 2
    %v891 = vmax.f32 %v889, %v890
    %v892 = vrot.slane %v891, 1
    %v893 = vmax.f32 %v891, %v892
    %v894 = vsel %vm816, %v719, -inf
    %v895 = vrot.slane %v894, 4
    %v896 = vmax.f32 %v894, %v895
    %v897 = vrot.slane %v896, 2
    %v898 = vmax.f32 %v896, %v897
    %v899 = vrot.slane %v898, 1
    %v900 = vmax.f32 %v898, %v899
    %v901 = vsel %vm816, %v727, -inf
    %v902 = vrot.slane %v901, 4
    %v903 = vmax.f32 %v901, %v902
    %v904 = vrot.slane %v903, 2
    %v905 = vmax.f32 %v903, %v904
    %v906 = vrot.slane %v905, 1
    %v907 = vmax.f32 %v905, %v906
    %v908 = vsel %vm816, %v735, -inf
    %v909 = vrot.slane %v908, 4
    %v910 = vmax.f32 %v908, %v909
    %v911 = vrot.slane %v910, 2
    %v912 = vmax.f32 %v910, %v911
    %v913 = vrot.slane %v912, 1
    %v914 = vmax.f32 %v912, %v913
    %v915 = vsel %vm816, %v734, -inf
    %v916 = vrot.slane %v915, 4
    %v917 = vmax.f32 %v915, %v916
    %v918 = vrot.slane %v917, 2
    %v919 = vmax.f32 %v917, %v918
    %v920 = vrot.slane %v919, 1
    %v921 = vmax.f32 %v919, %v920
    %v922 = vsel %vm816, %v736, -inf
    %v923 = vrot.slane %v922, 4
    %v924 = vmax.f32 %v922, %v923
    %v925 = vrot.slane %v924, 2
    %v926 = vmax.f32 %v924, %v925
    %v927 = vrot.slane %v926, 1
    %v928 = vmax.f32 %v926, %v927
    %v929 = vsel %vm816, %v744, -inf
    %v930 = vrot.slane %v929, 4
    %v931 = vmax.f32 %v929, %v930
    %v932 = vrot.slane %v931, 2
    %v933 = vmax.f32 %v931, %v932
    %v934 = vrot.slane %v933, 1
    %v935 = vmax.f32 %v933, %v934
    %v936 = vsel %vm816, %v752, -inf
    %v937 = vrot.slane %v936, 4
    %v938 = vmax.f32 %v936, %v937
    %v939 = vrot.slane %v938, 2
    %v940 = vmax.f32 %v938, %v939
    %v941 = vrot.slane %v940, 1
    %v942 = vmax.f32 %v940, %v941
    %v943 = vsel %vm816, %v751, -inf
    %v944 = vrot.slane %v943, 4
    %v945 = vmax.f32 %v943, %v944
    %v946 = vrot.slane %v945, 2
    %v947 = vmax.f32 %v945, %v946
    %v948 = vrot.slane %v947, 1
    %v949 = vmax.f32 %v947, %v948
    %v950 = vsel %vm816, %v753, -inf
    %v951 = vrot.slane %v950, 4
    %v952 = vmax.f32 %v950, %v951
    %v953 = vrot.slane %v952, 2
    %v954 = vmax.f32 %v952, %v953
    %v955 = vrot.slane %v954, 1
    %v956 = vmax.f32 %v954, %v955
    %v957 = vsel %vm816, %v761, -inf
    %v958 = vrot.slane %v957, 4
    %v959 = vmax.f32 %v957, %v958
    %v960 = vrot.slane %v959, 2
    %v961 = vmax.f32 %v959, %v960
    %v962 = vrot.slane %v961, 1
    %v963 = vmax.f32 %v961, %v962
    %v964 = vsel %vm816, %v769, -inf
    %v965 = vrot.slane %v964, 4
    %v966 = vmax.f32 %v964, %v965
    %v967 = vrot.slane %v966, 2
    %v968 = vmax.f32 %v966, %v967
    %v969 = vrot.slane %v968, 1
    %v970 = vmax.f32 %v968, %v969
    %v971 = vsel %vm816, %v768, -inf
    %v972 = vrot.slane %v971, 4
    %v973 = vmax.f32 %v971, %v972
    %v974 = vrot.slane %v973, 2
    %v975 = vmax.f32 %v973, %v974
    %v976 = vrot.slane %v975, 1
    %v977 = vmax.f32 %v975, %v976
    %v978 = vsel %vm816, %v770, -inf
    %v979 = vrot.slane %v978, 4
    %v980 = vmax.f32 %v978, %v979
    %v981 = vrot.slane %v980, 2
    %v982 = vmax.f32 %v980, %v981
    %v983 = vrot.slane %v982, 1
    %v984 = vmax.f32 %v982, %v983
    %v985 = vsel %vm816, %v778, -inf
    %v986 = vrot.slane %v985, 4
    %v987 = vmax.f32 %v985, %v986
    %v988 = vrot.slane %v987, 2
    %v989 = vmax.f32 %v987, %v988
    %v990 = vrot.slane %v989, 1
    %v991 = vmax.f32 %v989, %v990
    %v992 = vsel %vm816, %v786, -inf
    %v993 = vrot.slane %v992, 4
    %v994 = vmax.f32 %v992, %v993
    %v995 = vrot.slane %v994, 2
    %v996 = vmax.f32 %v994, %v995
    %v997 = vrot.slane %v996, 1
    %v998 = vmax.f32 %v996, %v997
    %v999 = vsel %vm816, %v785, -inf
    %v1000 = vrot.slane %v999, 4
    %v1001 = vmax.f32 %v999, %v1000
    %v1002 = vrot.slane %v1001, 2
    %v1003 = vmax.f32 %v1001, %v1002
    %v1004 = vrot.slane %v1003, 1
    %v1005 = vmax.f32 %v1003, %v1004
    %v1006 = vsel %vm816, %v787, -inf
    %v1007 = vrot.slane %v1006, 4
    %v1008 = vmax.f32 %v1006, %v1007
    %v1009 = vrot.slane %v1008, 2
    %v1010 = vmax.f32 %v1008, %v1009
    %v1011 = vrot.slane %v1010, 1
    %v1012 = vmax.f32 %v1010, %v1011
    %vm1033 = vcmask 1041409
    %v1034 = vsel %vm1033, %v830, %v823
    %vm1035 = vcmask 1042434
    %v1036 = vsel %vm1035, %v837, %v1034
    %vm1037 = vcmask 1043459
    %v1038 = vsel %vm1037, %v844, %v1036
    %vm1039 = vcmask 1044484
    %v1040 = vsel %vm1039, %v851, %v1038
    %vm1041 = vcmask 1045509
    %v1042 = vsel %vm1041, %v858, %v1040
    %vm1043 = vcmask 1046534
    %v1044 = vsel %vm1043, %v865, %v1042
    %vm1045 = vcmask 1047559
    %v1046 = vsel %vm1045, %v872, %v1044
    %v1047 = vsel %vm1033, %v886, %v879
    %v1048 = vsel %vm1033, %v928, %v921
    %v1049 = vsel %vm1035, %v935, %v1048
    %v1050 = vsel %vm1037, %v942, %v1049
    %v1051 = vsel %vm1039, %v949, %v1050
    %v1052 = vsel %vm1041, %v956, %v1051
    %v1053 = vsel %vm1043, %v963, %v1052
    %v1054 = vsel %vm1045, %v970, %v1053
    %v1055 = vsel %vm1033, %v984, %v977
    %v1058 = vsel %vm1033, %v837, %v830
    %v1059 = vsel %vm1035, %v844, %v1058
    %v1060 = vsel %vm1037, %v851, %v1059
    %v1061 = vsel %vm1039, %v858, %v1060
    %v1062 = vsel %vm1041, %v865, %v1061
    %v1063 = vsel %vm1043, %v872, %v1062
    %v1064 = vsel %vm1045, %v879, %v1063
    %v1065 = vsel %vm1033, %v893, %v886
    %v1066 = vsel %vm1033, %v935, %v928
    %v1067 = vsel %vm1035, %v942, %v1066
    %v1068 = vsel %vm1037, %v949, %v1067
    %v1069 = vsel %vm1039, %v956, %v1068
    %v1070 = vsel %vm1041, %v963, %v1069
    %v1071 = vsel %vm1043, %v970, %v1070
    %v1072 = vsel %vm1045, %v977, %v1071
    %v1073 = vsel %vm1033, %v991, %v984
    %v1076 = vsel %vm1033, %v844, %v837
    %v1077 = vsel %vm1035, %v851, %v1076
    %v1078 = vsel %vm1037, %v858, %v1077
    %v1079 = vsel %vm1039, %v865, %v1078
    %v1080 = vsel %vm1041, %v872, %v1079
    %v1081 = vsel %vm1043, %v879, %v1080
    %v1082 = vsel %vm1045, %v886, %v1081
    %v1083 = vsel %vm1033, %v900, %v893
    %v1084 = vsel %vm1033, %v942, %v935
    %v1085 = vsel %vm1035, %v949, %v1084
    %v1086 = vsel %vm1037, %v956, %v1085
    %v1087 = vsel %vm1039, %v963, %v1086
    %v1088 = vsel %vm1041, %v970, %v1087
    %v1089 = vsel %vm1043, %v977, %v1088
    %v1090 = vsel %vm1045, %v984, %v1089
    %v1091 = vsel %vm1033, %v998, %v991
    %v1094 = vsel %vm1033, %v851, %v844
    %v1095 = vsel %vm1035, %v858, %v1094
    %v1096 = vsel %vm1037, %v865, %v1095
    %v1097 = vsel %vm1039, %v872, %v1096
    %v1098 = vsel %vm1041, %v879, %v1097
    %v1099 = vsel %vm1043, %v886, %v1098
    %v1100 = vsel %vm1045, %v893, %v1099
    %v1101 = vsel %vm1033, %v907, %v900
    %v1102 = vsel %vm1033, %v949, %v942
    %v1103 = vsel %vm1035, %v956, %v1102
    %v1104 = vsel %vm1037, %v963, %v1103
    %v1105 = vsel %vm1039, %v970, %v1104
    %v1106 = vsel %vm1041, %v977, %v1105
    %v1107 = vsel %vm1043, %v984, %v1106
    %v1108 = vsel %vm1045, %v991, %v1107
    %v1109 = vsel %vm1033, %v1005, %v998
    %v1112 = vsel %vm1033, %v858, %v851
    %v1113 = vsel %vm1035, %v865, %v1112
    %v1114 = vsel %vm1037, %v872, %v1113
    %v1115 = vsel %vm1039, %v879, %v1114
    %v1116 = vsel %vm1041, %v886, %v1115
    %v1117 = vsel %vm1043, %v893, %v1116
    %v1118 = vsel %vm1045, %v900, %v1117
    %v1119 = vsel %vm1033, %v914, %v907
    %v1120 = vsel %vm1033, %v956, %v949
    %v1121 = vsel %vm1035, %v963, %v1120
    %v1122 = vsel %vm1037, %v970, %v1121
    %v1123 = vsel %vm1039, %v977, %v1122
    %v1124 = vsel %vm1041, %v984, %v1123
    %v1125 = vsel %vm1043, %v991, %v1124
    %v1126 = vsel %vm1045, %v998, %v1125
    %v1127 = vsel %vm1033, %v1012, %v1005
    %v1128 = vcombine.low %v1046, %v1064
    %v1129 = vcombine.high %v1046, %v1064
    %v1130 = vcombine.low %v1082, %v1100
    %v1131 = vcombine.high %v1082, %v1100
    %v1133 = vunpack.c.l.s4 1983009808
    %v1134 = vunpack.c.0.s8 %v1133
    %v1135 = vlaneseq
    %v1136 = vshrl.u32 %v1135, 7
    %v1137 = vsub.s32 %v1134, %v1136
    %v1138 = vrot.slane %v1128, %v1137
    %v1140 = vunpack.c.l.s4 1983009808
    %v1141 = vunpack.c.0.s8 %v1140
    %v1142 = vlaneseq
    %v1143 = vshrl.u32 %v1142, 7
    %v1144 = vsub.s32 %v1141, %v1143
    %v1145 = vrot.slane %v1129, %v1144
    %v1147 = vunpack.c.l.s4 1983009808
    %v1148 = vunpack.c.0.s8 %v1147
    %v1149 = vlaneseq
    %v1150 = vshrl.u32 %v1149, 7
    %v1151 = vsub.s32 %v1148, %v1150
    %v1152 = vrot.slane %v1130, %v1151
    %v1154 = vunpack.c.l.s4 1983009808
    %v1155 = vunpack.c.0.s8 %v1154
    %v1156 = vlaneseq
    %v1157 = vshrl.u32 %v1156, 7
    %v1158 = vsub.s32 %v1155, %v1157
    %v1159 = vrot.slane %v1131, %v1158
    %v1160 = vcombine.low %v1138, %v1152
    %v1161 = vcombine.high %v1138, %v1152
    %v1162 = vcombine.low %v1145, %v1159
    %v1163 = vcombine.high %v1145, %v1159
    %v1164 = vcombine.high %v1118, %v1118
    %v1166 = vunpack.c.l.s4 1983009808
    %v1167 = vunpack.c.0.s8 %v1166
    %v1168 = vlaneseq
    %v1169 = vshrl.u32 %v1168, 7
    %v1170 = vsub.s32 %v1167, %v1169
    %v1171 = vrot.slane %v1118, %v1170
    %v1173 = vunpack.c.l.s4 1983009808
    %v1174 = vunpack.c.0.s8 %v1173
    %v1175 = vlaneseq
    %v1176 = vshrl.u32 %v1175, 7
    %v1177 = vsub.s32 %v1174, %v1176
    %v1178 = vrot.slane %v1164, %v1177
    %v1179 = vcombine.high %v1171, %v1171
    %v1180 = vcombine.high %v1178, %v1178
    %v1181 = vcombine.low %v1047, %v1065
    %v1182 = vcombine.low %v1083, %v1101
    %v1184 = vunpack.c.l.s4 1983009808
    %v1185 = vunpack.c.0.s8 %v1184
    %v1186 = vlaneseq
    %v1187 = vshrl.u32 %v1186, 7
    %v1188 = vsub.s32 %v1185, %v1187
    %v1189 = vrot.slane %v1181, %v1188
    %v1191 = vunpack.c.l.s4 1983009808
    %v1192 = vunpack.c.0.s8 %v1191
    %v1193 = vlaneseq
    %v1194 = vshrl.u32 %v1193, 7
    %v1195 = vsub.s32 %v1192, %v1194
    %v1196 = vrot.slane %v1182, %v1195
    %v1197 = vcombine.low %v1189, %v1196
    %v1199 = vunpack.c.l.s4 1983009808
    %v1200 = vunpack.c.0.s8 %v1199
    %v1201 = vlaneseq
    %v1202 = vshrl.u32 %v1201, 7
    %v1203 = vsub.s32 %v1200, %v1202
    %v1204 = vrot.slane %v1119, %v1203
    %v1205 = vcombine.low %v1054, %v1072
    %v1206 = vcombine.high %v1054, %v1072
    %v1207 = vcombine.low %v1090, %v1108
    %v1208 = vcombine.high %v1090, %v1108
    %v1210 = vunpack.c.l.s4 1983009808
    %v1211 = vunpack.c.0.s8 %v1210
    %v1212 = vlaneseq
    %v1213 = vshrl.u32 %v1212, 7
    %v1214 = vsub.s32 %v1211, %v1213
    %v1215 = vrot.slane %v1205, %v1214
    %v1217 = vunpack.c.l.s4 1983009808
    %v1218 = vunpack.c.0.s8 %v1217
    %v1219 = vlaneseq
    %v1220 = vshrl.u32 %v1219, 7
    %v1221 = vsub.s32 %v1218, %v1220
    %v1222 = vrot.slane %v1206, %v1221
    %v1224 = vunpack.c.l.s4 1983009808
    %v1225 = vunpack.c.0.s8 %v1224
    %v1226 = vlaneseq
    %v1227 = vshrl.u32 %v1226, 7
    %v1228 = vsub.s32 %v1225, %v1227
    %v1229 = vrot.slane %v1207, %v1228
    %v1231 = vunpack.c.l.s4 1983009808
    %v1232 = vunpack.c.0.s8 %v1231
    %v1233 = vlaneseq
    %v1234 = vshrl.u32 %v1233, 7
    %v1235 = vsub.s32 %v1232, %v1234
    %v1236 = vrot.slane %v1208, %v1235
    %v1237 = vcombine.low %v1215, %v1229
    %v1238 = vcombine.high %v1215, %v1229
    %v1239 = vcombine.low %v1222, %v1236
    %v1240 = vcombine.high %v1222, %v1236
    %v1241 = vcombine.high %v1126, %v1126
    %v1243 = vunpack.c.l.s4 1983009808
    %v1244 = vunpack.c.0.s8 %v1243
    %v1245 = vlaneseq
    %v1246 = vshrl.u32 %v1245, 7
    %v1247 = vsub.s32 %v1244, %v1246
    %v1248 = vrot.slane %v1126, %v1247
    %v1250 = vunpack.c.l.s4 1983009808
    %v1251 = vunpack.c.0.s8 %v1250
    %v1252 = vlaneseq
    %v1253 = vshrl.u32 %v1252, 7
    %v1254 = vsub.s32 %v1251, %v1253
    %v1255 = vrot.slane %v1241, %v1254
    %v1256 = vcombine.high %v1248, %v1248
    %v1257 = vcombine.high %v1255, %v1255
    %v1258 = vcombine.low %v1055, %v1073
    %v1259 = vcombine.low %v1091, %v1109
    %v1261 = vunpack.c.l.s4 1983009808
    %v1262 = vunpack.c.0.s8 %v1261
    %v1263 = vlaneseq
    %v1264 = vshrl.u32 %v1263, 7
    %v1265 = vsub.s32 %v1262, %v1264
    %v1266 = vrot.slane %v1258, %v1265
    %v1268 = vunpack.c.l.s4 1983009808
    %v1269 = vunpack.c.0.s8 %v1268
    %v1270 = vlaneseq
    %v1271 = vshrl.u32 %v1270, 7
    %v1272 = vsub.s32 %v1269, %v1271
    %v1273 = vrot.slane %v1259, %v1272
    %v1274 = vcombine.low %v1266, %v1273
    %v1276 = vunpack.c.l.s4 1983009808
    %v1277 = vunpack.c.0.s8 %v1276
    %v1278 = vlaneseq
    %v1279 = vshrl.u32 %v1278, 7
    %v1280 = vsub.s32 %v1277, %v1279
    %v1281 = vrot.slane %v1127, %v1280
    %v1282 = vld [vmem:[#allocation6] sm:$0xff]
    %v1283 = vld [vmem:[#allocation6 + $0x8] sm:$0xff]
    %v1284 = vld [vmem:[#allocation6 + $0x10] sm:$0xff]
    %v1285 = vld [vmem:[#allocation6 + $0x18] sm:$0xff]
    %v1286 = vld [vmem:[#allocation6 + $0x20] sm:$0xff]
    %v1287 = vld [vmem:[#allocation6 + $0x28] sm:$0xff]
    %v1288 = vld [vmem:[#allocation6 + $0x30] sm:$0xff]
    %v1289 = vld [vmem:[#allocation6 + $0x38] sm:$0xff]
    %v1290 = vld [vmem:[#allocation6 + $0x40] sm:$0xff]
    %v1291 = vld [vmem:[#allocation6 + $0x48] sm:$0xff]
    %v1292 = vld [vmem:[#allocation6 + $0x50] sm:$0xff]
    %v1293 = vld [vmem:[#allocation6 + $0x58] sm:$0xff]
    %v1294 = vld [vmem:[#allocation6 + $0x60] sm:$0xff]
    %v1295 = vld [vmem:[#allocation6 + $0x68] sm:$0xff]
    %v1296 = vld [vmem:[#allocation6 + $0x70] sm:$0xff]
    %v1297 = vld [vmem:[#allocation6 + $0x78] sm:$0xff]
    %v1298 = vld [vmem:[#allocation6 + $0x80] sm:$0xff]
    %v1299 = vld [vmem:[#allocation6 + $0x88] sm:$0xff]
    %v1300 = vld [vmem:[#allocation6 + $0x90] sm:$0xff]
    %v1301 = vld [vmem:[#allocation6 + $0x98] sm:$0xff]
    %v1302 = vld [vmem:[#allocation6 + $0xa0] sm:$0xff]
    %v1303 = vld [vmem:[#allocation6 + $0xa8] sm:$0xff]
    %v1304 = vld [vmem:[#allocation6 + $0xb0] sm:$0xff]
    %v1305 = vld [vmem:[#allocation6 + $0xb8] sm:$0xff]
    %v1306 = vld [vmem:[#allocation6 + $0xc0] sm:$0xff]
    %v1307 = vld [vmem:[#allocation6 + $0xc8] sm:$0xff]
    %v1308 = vld [vmem:[#allocation6 + $0xd0] sm:$0xff]
    %v1309 = vld [vmem:[#allocation6 + $0xd8] sm:$0xff]
    %v1310 = vld [vmem:[#allocation6 + $0xe0] sm:$0xff]
    %v1311 = vld [vmem:[#allocation6 + $0xe8] sm:$0xff]
    %v1312 = vld [vmem:[#allocation6 + $0xf0] sm:$0xff]
    %v1313 = vld [vmem:[#allocation6 + $0xf8] sm:$0xff]
    %v1314 = vld [vmem:[#allocation6 + $0x100] sm:$0xff]
    %v1315 = vld [vmem:[#allocation6 + $0x108] sm:$0xff]
    %v1316 = vld [vmem:[#allocation6 + $0x110] sm:$0xff]
    %v1317 = vld [vmem:[#allocation6 + $0x118] sm:$0xff]
    %v1318 = vld [vmem:[#allocation6 + $0x120] sm:$0xff]
    %v1319 = vld [vmem:[#allocation6 + $0x128] sm:$0xff]
    %v1320 = vld [vmem:[#allocation6 + $0x130] sm:$0xff]
    %v1321 = vld [vmem:[#allocation6 + $0x138] sm:$0xff]
    %v1322 = vld [vmem:[#allocation6 + $0x140] sm:$0xff]
    %v1323 = vld [vmem:[#allocation6 + $0x148] sm:$0xff]
    %v1324 = vld [vmem:[#allocation6 + $0x150] sm:$0xff]
    %v1325 = vld [vmem:[#allocation6 + $0x158] sm:$0xff]
    %v1326 = vld [vmem:[#allocation6 + $0x160] sm:$0xff]
    %v1327 = vld [vmem:[#allocation6 + $0x168] sm:$0xff]
    %v1328 = vld [vmem:[#allocation6 + $0x170] sm:$0xff]
    %v1329 = vld [vmem:[#allocation6 + $0x178] sm:$0xff]
    %v1330 = vld [vmem:[#allocation6 + $0x180] sm:$0xff]
    %v1331 = vld [vmem:[#allocation6 + $0x188] sm:$0xff]
    %v1332 = vld [vmem:[#allocation6 + $0x190] sm:$0xff]
    %v1333 = vld [vmem:[#allocation6 + $0x198] sm:$0xff]
    %v1334 = vld [vmem:[#allocation6 + $0x1a0] sm:$0xff]
    %v1335 = vld [vmem:[#allocation6 + $0x1a8] sm:$0xff]
    %v1336 = vld [vmem:[#allocation6 + $0x1b0] sm:$0xff]
    %v1337 = vld [vmem:[#allocation6 + $0x1b8] sm:$0xff]
    %v1338 = vld [vmem:[#allocation6 + $0x1c0] sm:$0xff]
    %v1339 = vld [vmem:[#allocation6 + $0x1c8] sm:$0xff]
    %v1340 = vld [vmem:[#allocation6 + $0x1d0] sm:$0xff]
    %v1341 = vld [vmem:[#allocation6 + $0x1d8] sm:$0xff]
    %v1342 = vld [vmem:[#allocation6 + $0x1e0] sm:$0xff]
    %v1343 = vld [vmem:[#allocation6 + $0x1e8] sm:$0xff]
    %v1344 = vld [vmem:[#allocation6 + $0x1f0] sm:$0xff]
    %v1345 = vld [vmem:[#allocation6 + $0x1f8] sm:$0xff]
    %v1346 = vld [vmem:[#allocation6 + $0x200] sm:$0xff]
    %v1347 = vld [vmem:[#allocation6 + $0x208] sm:$0xff]
    %v1348 = vld [vmem:[#allocation6 + $0x210] sm:$0xff]
    %v1349 = vld [vmem:[#allocation6 + $0x218] sm:$0xff]
    %v1350 = vld [vmem:[#allocation6 + $0x220] sm:$0xff]
    %v1351 = vld [vmem:[#allocation6 + $0x228] sm:$0xff]
    %v1352 = vld [vmem:[#allocation6 + $0x230] sm:$0xff]
    %v1353 = vld [vmem:[#allocation6 + $0x238] sm:$0xff]
    %v1354 = vld [vmem:[#allocation6 + $0x240] sm:$0xff]
    %v1355 = vld [vmem:[#allocation6 + $0x248] sm:$0xff]
    %v1356 = vld [vmem:[#allocation6 + $0x250] sm:$0xff]
    %v1357 = vld [vmem:[#allocation6 + $0x258] sm:$0xff]
    %v1358 = vld [vmem:[#allocation6 + $0x260] sm:$0xff]
    %v1359 = vld [vmem:[#allocation6 + $0x268] sm:$0xff]
    %v1360 = vld [vmem:[#allocation6 + $0x270] sm:$0xff]
    %v1361 = vld [vmem:[#allocation6 + $0x278] sm:$0xff]
    %v1362 = vcombine.low %v1160, %v1161
    %v1363 = vcombine.high %v1160, %v1161
    %v1364 = vcombine.low %v1162, %v1163
    %v1365 = vcombine.high %v1162, %v1163
    %v1367 = vunpack.c.l.s4 1983009808
    %v1368 = vunpack.c.0.s8 %v1367
    %v1369 = vlaneseq
    %v1370 = vshrl.u32 %v1369, 7
    %v1371 = vsub.s32 %v1368, %v1370
    %v1372 = vrot.slane %v1362, %v1371
    %v1374 = vunpack.c.l.s4 1983009808
    %v1375 = vunpack.c.0.s8 %v1374
    %v1376 = vlaneseq
    %v1377 = vshrl.u32 %v1376, 7
    %v1378 = vsub.s32 %v1375, %v1377
    %v1379 = vrot.slane %v1363, %v1378
    %v1381 = vunpack.c.l.s4 1983009808
    %v1382 = vunpack.c.0.s8 %v1381
    %v1383 = vlaneseq
    %v1384 = vshrl.u32 %v1383, 7
    %v1385 = vsub.s32 %v1382, %v1384
    %v1386 = vrot.slane %v1364, %v1385
    %v1388 = vunpack.c.l.s4 1983009808
    %v1389 = vunpack.c.0.s8 %v1388
    %v1390 = vlaneseq
    %v1391 = vshrl.u32 %v1390, 7
    %v1392 = vsub.s32 %v1389, %v1391
    %v1393 = vrot.slane %v1365, %v1392
    %v1394 = vcombine.low %v1372, %v1386
    %v1395 = vcombine.high %v1372, %v1386
    %v1396 = vcombine.low %v1379, %v1393
    %v1397 = vcombine.high %v1379, %v1393
    %v1398 = vcombine.low %v1171, %v1179
    %v1399 = vcombine.low %v1178, %v1180
    %v1401 = vunpack.c.l.s4 1983009808
    %v1402 = vunpack.c.0.s8 %v1401
    %v1403 = vlaneseq
    %v1404 = vshrl.u32 %v1403, 7
    %v1405 = vsub.s32 %v1402, %v1404
    %v1406 = vrot.slane %v1398, %v1405
    %v1408 = vunpack.c.l.s4 1983009808
    %v1409 = vunpack.c.0.s8 %v1408
    %v1410 = vlaneseq
    %v1411 = vshrl.u32 %v1410, 7
    %v1412 = vsub.s32 %v1409, %v1411
    %v1413 = vrot.slane %v1399, %v1412
    %v1414 = vcombine.low %v1406, %v1413
    %v1415 = vcombine.low %v1197, %v1237
    %v1416 = vcombine.high %v1197, %v1237
    %v1417 = vcombine.low %v1238, %v1239
    %v1418 = vcombine.high %v1238, %v1239
    %v1420 = vunpack.c.l.s4 1983009808
    %v1421 = vunpack.c.0.s8 %v1420
    %v1422 = vlaneseq
    %v1423 = vshrl.u32 %v1422, 7
    %v1424 = vsub.s32 %v1421, %v1423
    %v1425 = vrot.slane %v1415, %v1424
    %v1427 = vunpack.c.l.s4 1983009808
    %v1428 = vunpack.c.0.s8 %v1427
    %v1429 = vlaneseq
    %v1430 = vshrl.u32 %v1429, 7
    %v1431 = vsub.s32 %v1428, %v1430
    %v1432 = vrot.slane %v1416, %v1431
    %v1434 = vunpack.c.l.s4 1983009808
    %v1435 = vunpack.c.0.s8 %v1434
    %v1436 = vlaneseq
    %v1437 = vshrl.u32 %v1436, 7
    %v1438 = vsub.s32 %v1435, %v1437
    %v1439 = vrot.slane %v1417, %v1438
    %v1441 = vunpack.c.l.s4 1983009808
    %v1442 = vunpack.c.0.s8 %v1441
    %v1443 = vlaneseq
    %v1444 = vshrl.u32 %v1443, 7
    %v1445 = vsub.s32 %v1442, %v1444
    %v1446 = vrot.slane %v1418, %v1445
    %v1447 = vcombine.low %v1425, %v1439
    %v1448 = vcombine.high %v1425, %v1439
    %v1449 = vcombine.low %v1432, %v1446
    %v1450 = vcombine.high %v1432, %v1446
    %v1451 = vcombine.low %v1204, %v1248
    %v1452 = vcombine.low %v1256, %v1255
    %v1454 = vunpack.c.l.s4 1983009808
    %v1455 = vunpack.c.0.s8 %v1454
    %v1456 = vlaneseq
    %v1457 = vshrl.u32 %v1456, 7
    %v1458 = vsub.s32 %v1455, %v1457
    %v1459 = vrot.slane %v1451, %v1458
    %v1461 = vunpack.c.l.s4 1983009808
    %v1462 = vunpack.c.0.s8 %v1461
    %v1463 = vlaneseq
    %v1464 = vshrl.u32 %v1463, 7
    %v1465 = vsub.s32 %v1462, %v1464
    %v1466 = vrot.slane %v1452, %v1465
    %v1467 = vcombine.low %v1459, %v1466
    %v1468 = vcombine.low %v1240, %v1274
    %v1469 = vcombine.high %v1240, %v1274
    %v1471 = vunpack.c.l.s4 1983009808
    %v1472 = vunpack.c.0.s8 %v1471
    %v1473 = vlaneseq
    %v1474 = vshrl.u32 %v1473, 7
    %v1475 = vsub.s32 %v1472, %v1474
    %v1476 = vrot.slane %v1468, %v1475
    %v1478 = vunpack.c.l.s4 1983009808
    %v1479 = vunpack.c.0.s8 %v1478
    %v1480 = vlaneseq
    %v1481 = vshrl.u32 %v1480, 7
    %v1482 = vsub.s32 %v1479, %v1481
    %v1483 = vrot.slane %v1469, %v1482
    %v1484 = vcombine.high %v1476, %v1476
    %v1485 = vcombine.high %v1483, %v1483
    %v1486 = vcombine.low %v1257, %v1281
    %v1488 = vunpack.c.l.s4 1983009808
    %v1489 = vunpack.c.0.s8 %v1488
    %v1490 = vlaneseq
    %v1491 = vshrl.u32 %v1490, 7
    %v1492 = vsub.s32 %v1489, %v1491
    %v1493 = vrot.slane %v1486, %v1492
    %1509 = vmatprep.subr.mxu0 0.0
    %1510 = vmatpush1.msra.mxu0 %v1282
    %1511 = vmatprep.subr.mxu0 0.0
    %1512 = vmatpush1.msra.mxu0 %v1283
    %1513 = vmatprep.subr.mxu0 0.0
    %1514 = vmatpush1.msra.mxu0 %v1284
    %1515 = vmatprep.subr.mxu0 0.0
    %1516 = vmatpush1.msra.mxu0 %v1285
    %1517 = vmatprep.subr.mxu0 0.0
    %1518 = vmatpush1.msra.mxu0 %v1286
    %1519 = vmatprep.subr.mxu0 0.0
    %1520 = vmatpush1.msra.mxu0 %v1287
    %1521 = vmatprep.subr.mxu0 0.0
    %1522 = vmatpush1.msra.mxu0 %v1288
    %1523 = vmatprep.subr.mxu0 0.0
    %1524 = vmatpush1.msra.mxu0 %v1289
    %1525 = vmatprep.subr.mxu0 0.0
    %1526 = vmatpush1.msra.mxu0 %v1290
    %1527 = vmatprep.subr.mxu0 0.0
    %1528 = vmatpush1.msra.mxu0 %v1291
    %1529 = vmatprep.subr.mxu0 0.0
    %1530 = vmatpush1.msra.mxu0 %v1292
    %1531 = vmatprep.subr.mxu0 0.0
    %1532 = vmatpush1.msra.mxu0 %v1293
    %1533 = vmatprep.subr.mxu0 0.0
    %1534 = vmatpush1.msra.mxu0 %v1294
    %1535 = vmatprep.subr.mxu0 0.0
    %1536 = vmatpush1.msra.mxu0 %v1295
    %1537 = vmatprep.subr.mxu0 0.0
    %1538 = vmatpush1.msra.mxu0 %v1296
    %1539 = vmatprep.subr.mxu0 0.0
    %1540 = vmatpush1.msra.mxu0 %v1297
    %1541 = vmatprep.subr.mxu0 0.0
    %1542 = vmatpush1.msra.mxu0 %v1298
    %1543 = vmatprep.subr.mxu0 0.0
    %1544 = vmatpush1.msra.mxu0 %v1299
    %1545 = vmatprep.subr.mxu0 0.0
    %1546 = vmatpush1.msra.mxu0 %v1300
    %1547 = vmatprep.subr.mxu0 0.0
    %1548 = vmatpush1.msra.mxu0 %v1301
    %1549 = vmatprep.subr.mxu0 0.0
    %1550 = vmatpush1.msra.mxu0 %v1302
    %1551 = vmatprep.subr.mxu0 0.0
    %1552 = vmatpush1.msra.mxu0 %v1303
    %1553 = vmatprep.subr.mxu0 0.0
    %1554 = vmatpush1.msra.mxu0 %v1304
    %1555 = vmatprep.subr.mxu0 0.0
    %1556 = vmatpush1.msra.mxu0 %v1305
    %1557 = vmatprep.subr.mxu0 0.0
    %1558 = vmatpush1.msra.mxu0 %v1306
    %1559 = vmatprep.subr.mxu0 0.0
    %1560 = vmatpush1.msra.mxu0 %v1307
    %1561 = vmatprep.subr.mxu0 0.0
    %1562 = vmatpush1.msra.mxu0 %v1308
    %1563 = vmatprep.subr.mxu0 0.0
    %1564 = vmatpush1.msra.mxu0 %v1309
    %1565 = vmatprep.subr.mxu0 0.0
    %1566 = vmatpush1.msra.mxu0 %v1310
    %1567 = vmatprep.subr.mxu0 0.0
    %1568 = vmatpush1.msra.mxu0 %v1311
    %1569 = vmatprep.subr.mxu0 0.0
    %1570 = vmatpush1.msra.mxu0 %v1312
    %1571 = vmatprep.subr.mxu0 0.0
    %1572 = vmatpush1.msra.mxu0 %v1313
    %1573 = vmatprep.mubr.f32.mxu0 %v1395
    %1574 = vmatmul.mubr.f32.gmra.mrb[0].mxu0 %v1394
    %v1575 = vpop.f32.mrb[0].mxu0
    %v1576 = vadd.f32 0.0, %v1575
    %v1577 = vpop.f32.mrb[0].mxu0
    %1578 = vmatprep.mubr.f32.mxu0 %v1448
    %1579 = vmatmul.mubr.f32.gmra.mrb[0].mxu0 %v1447
    %v1580 = vpop.f32.mrb[0].mxu0
    %v1581 = vadd.f32 0.0, %v1580
    %v1582 = vpop.f32.mrb[0].mxu0
    %1583 = vmatprep.mubr.f32.mxu0 %v1484
    %1584 = vmatmul.mubr.f32.gmra.mrb[0].mxu0 %v1476
    %v1585 = vpop.f32.mrb[0].mxu0
    %v1586 = vadd.f32 0.0, %v1585
    %v1587 = vpop.f32.mrb[0].mxu0
    %1588 = vdwg.mxu0
    %1589 = vmatprep.subr.mxu0 0.0
    %1590 = vmatpush1.msra.mxu0 %v1314
    %1591 = vmatprep.subr.mxu0 0.0
    %1592 = vmatpush1.msra.mxu0 %v1315
    %1593 = vmatprep.subr.mxu0 0.0
    %1594 = vmatpush1.msra.mxu0 %v1316
    %1595 = vmatprep.subr.mxu0 0.0
    %1596 = vmatpush1.msra.mxu0 %v1317
    %1597 = vmatprep.subr.mxu0 0.0
    %1598 = vmatpush1.msra.mxu0 %v1318
    %1599 = vmatprep.subr.mxu0 0.0
    %1600 = vmatpush1.msra.mxu0 %v1319
    %1601 = vmatprep.subr.mxu0 0.0
    %1602 = vmatpush1.msra.mxu0 %v1320
    %1603 = vmatprep.subr.mxu0 0.0
    %1604 = vmatpush1.msra.mxu0 %v1321
    %1605 = vmatprep.subr.mxu0 0.0
    %1606 = vmatpush1.msra.mxu0 %v1322
    %1607 = vmatprep.subr.mxu0 0.0
    %1608 = vmatpush1.msra.mxu0 %v1323
    %1609 = vmatprep.subr.mxu0 0.0
    %1610 = vmatpush1.msra.mxu0 %v1324
    %1611 = vmatprep.subr.mxu0 0.0
    %1612 = vmatpush1.msra.mxu0 %v1325
    %1613 = vmatprep.subr.mxu0 0.0
    %1614 = vmatpush1.msra.mxu0 %v1326
    %1615 = vmatprep.subr.mxu0 0.0
    %1616 = vmatpush1.msra.mxu0 %v1327
    %1617 = vmatprep.subr.mxu0 0.0
    %1618 = vmatpush1.msra.mxu0 %v1328
    %1619 = vmatprep.subr.mxu0 0.0
    %1620 = vmatpush1.msra.mxu0 %v1329
    %1621 = vmatprep.subr.mxu0 0.0
    %1622 = vmatpush1.msra.mxu0 %v1330
    %1623 = vmatprep.subr.mxu0 0.0
    %1624 = vmatpush1.msra.mxu0 %v1331
    %1625 = vmatprep.subr.mxu0 0.0
    %1626 = vmatpush1.msra.mxu0 %v1332
    %1627 = vmatprep.subr.mxu0 0.0
    %1628 = vmatpush1.msra.mxu0 %v1333
    %1629 = vmatprep.subr.mxu0 0.0
    %1630 = vmatpush1.msra.mxu0 %v1334
    %1631 = vmatprep.subr.mxu0 0.0
    %1632 = vmatpush1.msra.mxu0 %v1335
    %1633 = vmatprep.subr.mxu0 0.0
    %1634 = vmatpush1.msra.mxu0 %v1336
    %1635 = vmatprep.subr.mxu0 0.0
    %1636 = vmatpush1.msra.mxu0 %v1337
    %1637 = vmatprep.subr.mxu0 0.0
    %1638 = vmatpush1.msra.mxu0 %v1338
    %1639 = vmatprep.subr.mxu0 0.0
    %1640 = vmatpush1.msra.mxu0 %v1339
    %1641 = vmatprep.subr.mxu0 0.0
    %1642 = vmatpush1.msra.mxu0 %v1340
    %1643 = vmatprep.subr.mxu0 0.0
    %1644 = vmatpush1.msra.mxu0 %v1341
    %1645 = vmatprep.subr.mxu0 0.0
    %1646 = vmatpush1.msra.mxu0 %v1342
    %1647 = vmatprep.subr.mxu0 0.0
    %1648 = vmatpush1.msra.mxu0 %v1343
    %1649 = vmatprep.subr.mxu0 0.0
    %1650 = vmatpush1.msra.mxu0 %v1344
    %1651 = vmatprep.subr.mxu0 0.0
    %1652 = vmatpush1.msra.mxu0 %v1345
    %1653 = vmatprep.mubr.f32.mxu0 %v1397
    %1654 = vmatmul.mubr.f32.gmra.mrb[0].mxu0 %v1396
    %v1655 = vpop.f32.mrb[0].mxu0
    %v1656 = vadd.f32 %v1576, %v1655
    %v1657 = vpop.f32.mrb[0].mxu0
    %1658 = vmatprep.mubr.f32.mxu0 %v1450
    %1659 = vmatmul.mubr.f32.gmra.mrb[0].mxu0 %v1449
    %v1660 = vpop.f32.mrb[0].mxu0
    %v1661 = vadd.f32 %v1581, %v1660
    %v1662 = vpop.f32.mrb[0].mxu0
    %1663 = vmatprep.mubr.f32.mxu0 %v1485
    %1664 = vmatmul.mubr.f32.gmra.mrb[0].mxu0 %v1483
    %v1665 = vpop.f32.mrb[0].mxu0
    %v1666 = vadd.f32 %v1586, %v1665
    %v1667 = vpop.f32.mrb[0].mxu0
    %1668 = vdwg.mxu0
    %1669 = vmatprep.subr.mxu0 0.0
    %1670 = vmatpush1.msra.mxu0 %v1346
    %1671 = vmatprep.subr.mxu0 0.0
    %1672 = vmatpush1.msra.mxu0 %v1347
    %1673 = vmatprep.subr.mxu0 0.0
    %1674 = vmatpush1.msra.mxu0 %v1348
    %1675 = vmatprep.subr.mxu0 0.0
    %1676 = vmatpush1.msra.mxu0 %v1349
    %1677 = vmatprep.subr.mxu0 0.0
    %1678 = vmatpush1.msra.mxu0 %v1350
    %1679 = vmatprep.subr.mxu0 0.0
    %1680 = vmatpush1.msra.mxu0 %v1351
    %1681 = vmatprep.subr.mxu0 0.0
    %1682 = vmatpush1.msra.mxu0 %v1352
    %1683 = vmatprep.subr.mxu0 0.0
    %1684 = vmatpush1.msra.mxu0 %v1353
    %1685 = vmatprep.subr.mxu0 0.0
    %1686 = vmatpush1.msra.mxu0 %v1354
    %1687 = vmatprep.subr.mxu0 0.0
    %1688 = vmatpush1.msra.mxu0 %v1355
    %1689 = vmatprep.subr.mxu0 0.0
    %1690 = vmatpush1.msra.mxu0 %v1356
    %1691 = vmatprep.subr.mxu0 0.0
    %1692 = vmatpush1.msra.mxu0 %v1357
    %1693 = vmatprep.subr.mxu0 0.0
    %1694 = vmatpush1.msra.mxu0 %v1358
    %1695 = vmatprep.subr.mxu0 0.0
    %1696 = vmatpush1.msra.mxu0 %v1359
    %1697 = vmatprep.subr.mxu0 0.0
    %1698 = vmatpush1.msra.mxu0 %v1360
    %1699 = vmatprep.subr.mxu0 0.0
    %1700 = vmatpush1.msra.mxu0 %v1361
    %1701 = vmatprep.subr.mxu0 0.0
    %1702 = vmatpush1.msra.mxu0 0.0
    %1703 = vmatprep.subr.mxu0 0.0
    %1704 = vmatpush1.msra.mxu0 0.0
    %1705 = vmatprep.subr.mxu0 0.0
    %1706 = vmatpush1.msra.mxu0 0.0
    %1707 = vmatprep.subr.mxu0 0.0
    %1708 = vmatpush1.msra.mxu0 0.0
    %1709 = vmatprep.subr.mxu0 0.0
    %1710 = vmatpush1.msra.mxu0 0.0
    %1711 = vmatprep.subr.mxu0 0.0
    %1712 = vmatpush1.msra.mxu0 0.0
    %1713 = vmatprep.subr.mxu0 0.0
    %1714 = vmatpush1.msra.mxu0 0.0
    %1715 = vmatprep.subr.mxu0 0.0
    %1716 = vmatpush1.msra.mxu0 0.0
    %1717 = vmatprep.subr.mxu0 0.0
    %1718 = vmatpush1.msra.mxu0 0.0
    %1719 = vmatprep.subr.mxu0 0.0
    %1720 = vmatpush1.msra.mxu0 0.0
    %1721 = vmatprep.subr.mxu0 0.0
    %1722 = vmatpush1.msra.mxu0 0.0
    %1723 = vmatprep.subr.mxu0 0.0
    %1724 = vmatpush1.msra.mxu0 0.0
    %1725 = vmatprep.subr.mxu0 0.0
    %1726 = vmatpush1.msra.mxu0 0.0
    %1727 = vmatprep.subr.mxu0 0.0
    %1728 = vmatpush1.msra.mxu0 0.0
    %1729 = vmatprep.subr.mxu0 0.0
    %1730 = vmatpush1.msra.mxu0 0.0
    %1731 = vmatprep.subr.mxu0 0.0
    %1732 = vmatpush1.msra.mxu0 0.0
    %1733 = vmatprep.mubr.f32.mxu0 0.0
    %1734 = vmatmul.mubr.f32.gmra.mrb[0].mxu0 %v1414
    %v1735 = vpop.f32.mrb[0].mxu0
    %v1736 = vadd.f32 %v1656, %v1735
    %v1737 = vpop.f32.mrb[0].mxu0
    %1738 = vmatprep.mubr.f32.mxu0 0.0
    %1739 = vmatmul.mubr.f32.gmra.mrb[0].mxu0 %v1467
    %v1740 = vpop.f32.mrb[0].mxu0
    %v1741 = vadd.f32 %v1661, %v1740
    %v1742 = vpop.f32.mrb[0].mxu0
    %1743 = vmatprep.mubr.f32.mxu0 0.0
    %1744 = vmatmul.mubr.f32.gmra.mrb[0].mxu0 %v1493
    %v1745 = vpop.f32.mrb[0].mxu0
    %v1746 = vadd.f32 %v1666, %v1745
    %v1747 = vpop.f32.mrb[0].mxu0
    %1748 = vdwg.mxu0
    %v1749 = vld [vmem:[%s5] sm:$0x1]
    %v1751 = vlaneseq
    %v1752 = vshrl.u32 %v1751, 7
    %v1753 = vsub.s32 0, %v1752
    %v1754 = vrot.slane %v1749, %v1753
    %v1756 = vmul.f32 %v1736, %v1754
    %v1757 = vmul.f32 %v1741, %v1754
    %v1758 = vmul.f32 %v1746, %v1754
    %v1759 = vld [vmem:[%s6] sm:$0x1]
    %v1761 = vlaneseq
    %v1762 = vshrl.u32 %v1761, 7
    %v1763 = vsub.s32 0, %v1762
    %v1764 = vrot.slane %v1759, %v1763
    %v1766 = vadd.f32 %v1756, %v1764
    %v1767 = vadd.f32 %v1757, %v1764
    %v1768 = vadd.f32 %v1758, %v1764
    %v1769 = vmax.f32 %v1766, 0.0
    %v1770 = vmax.f32 %v1767, 0.0
    %v1771 = vmax.f32 %v1768, 0.0
    %v1775 = vcombine.high %v1769, %v1769
    %v1777 = vunpack.c.l.s4 1983009808
    %v1778 = vunpack.c.0.s8 %v1777
    %v1779 = vlaneseq
    %v1780 = vshrl.u32 %v1779, 7
    %v1781 = vsub.s32 %v1778, %v1780
    %v1782 = vrot.slane %v1769, %v1781
    %v1784 = vunpack.c.l.s4 1983009808
    %v1785 = vunpack.c.0.s8 %v1784
    %v1786 = vlaneseq
    %v1787 = vshrl.u32 %v1786, 7
    %v1788 = vsub.s32 %v1785, %v1787
    %v1789 = vrot.slane %v1775, %v1788
    %v1790 = vcombine.high %v1782, %v1782
    %v1791 = vcombine.high %v1789, %v1789
    %v1792 = vcombine.high %v1770, %v1770
    %v1794 = vunpack.c.l.s4 1983009808
    %v1795 = vunpack.c.0.s8 %v1794
    %v1796 = vlaneseq
    %v1797 = vshrl.u32 %v1796, 7
    %v1798 = vsub.s32 %v1795, %v1797
    %v1799 = vrot.slane %v1770, %v1798
    %v1801 = vunpack.c.l.s4 1983009808
    %v1802 = vunpack.c.0.s8 %v1801
    %v1803 = vlaneseq
    %v1804 = vshrl.u32 %v1803, 7
    %v1805 = vsub.s32 %v1802, %v1804
    %v1806 = vrot.slane %v1792, %v1805
    %v1807 = vcombine.high %v1799, %v1799
    %v1808 = vcombine.high %v1806, %v1806
    %v1810 = vunpack.c.l.s4 1983009808
    %v1811 = vunpack.c.0.s8 %v1810
    %v1812 = vlaneseq
    %v1813 = vshrl.u32 %v1812, 7
    %v1814 = vsub.s32 %v1811, %v1813
    %v1815 = vrot.slane %v1771, %v1814
    %v1816 = vcombine.high %v1815, %v1815
    %v1827 = vsel %vm816, %v1782, -inf
    %v1828 = vrot.slane %v1827, 4
    %v1829 = vmax.f32 %v1827, %v1828
    %v1830 = vrot.slane %v1829, 2
    %v1831 = vmax.f32 %v1829, %v1830
    %v1832 = vrot.slane %v1831, 1
    %v1833 = vmax.f32 %v1831, %v1832
    %v1834 = vsel %vm816, %v1790, -inf
    %v1835 = vrot.slane %v1834, 4
    %v1836 = vmax.f32 %v1834, %v1835
    %v1837 = vrot.slane %v1836, 2
    %v1838 = vmax.f32 %v1836, %v1837
    %v1839 = vrot.slane %v1838, 1
    %v1840 = vmax.f32 %v1838, %v1839
    %v1841 = vsel %vm816, %v1789, -inf
    %v1842 = vrot.slane %v1841, 4
    %v1843 = vmax.f32 %v1841, %v1842
    %v1844 = vrot.slane %v1843, 2
    %v1845 = vmax.f32 %v1843, %v1844
    %v1846 = vrot.slane %v1845, 1
    %v1847 = vmax.f32 %v1845, %v1846
    %v1848 = vsel %vm816, %v1791, -inf
    %v1849 = vrot.slane %v1848, 4
    %v1850 = vmax.f32 %v1848, %v1849
    %v1851 = vrot.slane %v1850, 2
    %v1852 = vmax.f32 %v1850, %v1851
    %v1853 = vrot.slane %v1852, 1
    %v1854 = vmax.f32 %v1852, %v1853
    %v1855 = vsel %vm816, %v1799, -inf
    %v1856 = vrot.slane %v1855, 4
    %v1857 = vmax.f32 %v1855, %v1856
    %v1858 = vrot.slane %v1857, 2
    %v1859 = vmax.f32 %v1857, %v1858
    %v1860 = vrot.slane %v1859, 1
    %v1861 = vmax.f32 %v1859, %v1860
    %v1862 = vsel %vm816, %v1807, -inf
    %v1863 = vrot.slane %v1862, 4
    %v1864 = vmax.f32 %v1862, %v1863
    %v1865 = vrot.slane %v1864, 2
    %v1866 = vmax.f32 %v1864, %v1865
    %v1867 = vrot.slane %v1866, 1
    %v1868 = vmax.f32 %v1866, %v1867
    %v1869 = vsel %vm816, %v1806, -inf
    %v1870 = vrot.slane %v1869, 4
    %v1871 = vmax.f32 %v1869, %v1870
    %v1872 = vrot.slane %v1871, 2
    %v1873 = vmax.f32 %v1871, %v1872
    %v1874 = vrot.slane %v1873, 1
    %v1875 = vmax.f32 %v1873, %v1874
    %v1876 = vsel %vm816, %v1808, -inf
    %v1877 = vrot.slane %v1876, 4
    %v1878 = vmax.f32 %v1876, %v1877
    %v1879 = vrot.slane %v1878, 2
    %v1880 = vmax.f32 %v1878, %v1879
    %v1881 = vrot.slane %v1880, 1
    %v1882 = vmax.f32 %v1880, %v1881
    %v1883 = vsel %vm816, %v1815, -inf
    %v1884 = vrot.slane %v1883, 4
    %v1885 = vmax.f32 %v1883, %v1884
    %v1886 = vrot.slane %v1885, 2
    %v1887 = vmax.f32 %v1885, %v1886
    %v1888 = vrot.slane %v1887, 1
    %v1889 = vmax.f32 %v1887, %v1888
    %v1890 = vsel %vm816, %v1816, -inf
    %v1891 = vrot.slane %v1890, 4
    %v1892 = vmax.f32 %v1890, %v1891
    %v1893 = vrot.slane %v1892, 2
    %v1894 = vmax.f32 %v1892, %v1893
    %v1895 = vrot.slane %v1894, 1
    %v1896 = vmax.f32 %v1894, %v1895
    %v1907 = vsel %vm1033, %v1840, %v1833
    %v1908 = vsel %vm1035, %v1847, %v1907
    %v1909 = vsel %vm1037, %v1854, %v1908
    %v1910 = vsel %vm1039, %v1861, %v1909
    %v1911 = vsel %vm1033, %v1875, %v1868
    %v1912 = vsel %vm1035, %v1882, %v1911
    %v1913 = vsel %vm1037, %v1889, %v1912
    %v1914 = vsel %vm1039, %v1896, %v1913
    %1917 = vst [vmem:[%s7] sm:$0x1f] %v1910
    %1918 = vst [vmem:[%s7 + $0x8] sm:$0x1f] %v1914
    // Predicated region
    $region42: #{tpu_custom_call.1} parent=1 // pred_check
      _
    $region43: #{tpu_custom_call.1} parent=1 // pred_check_branch
      %1920 = sbr.rel (0) target = $region45
    $region44: #{tpu_custom_call.1} parent=1 // pred_region
      _
    $region45: #{tpu_custom_call.1} parent=1 // pred_fallthru
      _
    // Predicated region
    $region46: #{tpu_custom_call.1} parent=1 // pred_check
      _
    $region47: #{tpu_custom_call.1} parent=1 // pred_check_branch
      %1922 = sbr.rel (0) target = $region49
    $region48: #{tpu_custom_call.1} parent=1 // pred_region
      _
    $region49: #{tpu_custom_call.1} parent=1 // pred_fallthru
      _
    %1923 = vsyncpa [#allocation3], 1
    %1924 = vsyncpa [#allocation5], 1

</llo_original>
